<compile_context>
chip_gen: v7x
topology: tpu7x:2x2x1
jax: 0.10.0
libtpu: 0.0.40
codegen_flags: <defaults>
</compile_context>

<pallas_src>
import jax
import jax.numpy as jnp
from jax.experimental import pallas as pl
from jax.experimental.pallas import tpu as pltpu


def ae_kernel(x_ref,
              w1_ref, b1_ref,
              w2_ref, b2_ref,
              w3_ref, b3_ref,
              w4_ref, b4_ref,
              o_ref):
    bf16 = jnp.bfloat16
    # encoder hidden: Linear(D -> 128) + ReLU  (bf16 MXU operands, f32 accumulate)
    h = jnp.dot(x_ref[...].astype(bf16), w1_ref[...], preferred_element_type=jnp.float32)
    h = jnp.maximum(h + b1_ref[...], 0.0)
    # encoder output: Linear(128 -> 128) + ReLU
    c = jnp.dot(h.astype(bf16), w2_ref[...], preferred_element_type=jnp.float32)
    c = jnp.maximum(c + b2_ref[...], 0.0)
    # decoder hidden: Linear(128 -> 128) + ReLU
    d = jnp.dot(c.astype(bf16), w3_ref[...], preferred_element_type=jnp.float32)
    d = jnp.maximum(d + b3_ref[...], 0.0)
    # decoder output: Linear(128 -> D) + ReLU
    r = jnp.dot(d.astype(bf16), w4_ref[...], preferred_element_type=jnp.float32)
    r = jnp.maximum(r + b4_ref[...], 0.0)
    o_ref[...] = r.astype(o_ref.dtype)


def _round_up(v, m):
    return ((v + m - 1) // m) * m


def _build_ae_call(B, D, H, tm, out_dtype, *, core_parallel, single_buffer_weights):
    act_spec = pl.BlockSpec((tm, D), lambda i: (i, 0))  # streamed per grid step

    if single_buffer_weights:
        # Constant index_map => never re-fetched; a single buffer saves VMEM.
        def const(shape):
            return pl.BlockSpec(shape, lambda i: (0, 0), pipeline_mode=pl.Buffered(1))
    else:
        def const(shape):
            return pl.BlockSpec(shape, lambda i: (0, 0))

    semantics = pltpu.CORE_PARALLEL if core_parallel else "parallel"

    return pl.pallas_call(
        ae_kernel,
        out_shape=jax.ShapeDtypeStruct((B, D), out_dtype),
        grid=(pl.cdiv(B, tm),),
        in_specs=[
            act_spec,
            const((D, H)), const((1, H)),
            const((H, H)), const((1, H)),
            const((H, H)), const((1, H)),
            const((H, D)), const((1, D)),
        ],
        out_specs=act_spec,
        compiler_params=pltpu.CompilerParams(
            dimension_semantics=(semantics,),
            # no vmem_limit override: kernel needs only a few MiB, and 64 MiB
            # would equal the entire physical VMEM on v7x.
        ),
    )


def prepare_params(params):
    """Cast weights to bf16 / biases to f32 once (hoisted out of the hot path)."""
    out = {}
    for k, v in params.items():
        out[k] = v.astype(jnp.bfloat16) if k.startswith("w") else v.astype(jnp.float32)
    return out


def ae_forward(x, params, *, max_tile_m=1024, out_dtype=jnp.float32):
    """x: (B, D) float32 or bfloat16. params: w1..w4 stored (in, out), b1..b4 stored (1, out)."""
    B, D = x.shape
    H = params["w1"].shape[1]
    assert params["w4"].shape == (H, D)

    def _as(dt, a):  # no-op when params were already prepared
        return a if a.dtype == dt else a.astype(dt)

    w1, w2, w3, w4 = (_as(jnp.bfloat16, params[k]) for k in ("w1", "w2", "w3", "w4"))
    b1, b2, b3, b4 = (_as(jnp.float32, params[k]) for k in ("b1", "b2", "b3", "b4"))
    args = (x, w1, b1, w2, b2, w3, b3, w4, b4)

    # Batch tile: scale with B so there are >=2 grid steps (two TCs on v7x),
    # cap at max_tile_m, keep a multiple of 16 (bf16 sublane packing).
    tm = min(max_tile_m, max(16, _round_up(pl.cdiv(B, 2), 16)))

    try:
        # v7x-oriented config: core-parallel batch axis + single-buffered weights.
        call = _build_ae_call(B, D, H, tm, out_dtype,
                              core_parallel=True, single_buffer_weights=True)
        return call(*args)
    except Exception:
        # Safe fallback (proven on all generations): plain "parallel" semantics,
        # default double-buffered weight specs.
        call = _build_ae_call(B, D, H, tm, out_dtype,
                              core_parallel=False, single_buffer_weights=False)
        return call(*args)


def init_params(key, input_shape, hidden=128):
    """Deterministic init mimicking nn.Linear's U(-1/sqrt(fan_in), 1/sqrt(fan_in)).

    Weights are returned pre-cast to bf16 (MXU-native), biases in f32, so no
    per-forward-call casts are needed.
    """
    ks = jax.random.split(key, 8)

    def linear(kw, kb, fan_in, fan_out):
        bound = 1.0 / jnp.sqrt(fan_in)
        w = jax.random.uniform(kw, (fan_in, fan_out), jnp.float32, -bound, bound)
        b = jax.random.uniform(kb, (1, fan_out), jnp.float32, -bound, bound)
        return w, b

    w1, b1 = linear(ks[0], ks[1], input_shape, hidden)
    w2, b2 = linear(ks[2], ks[3], hidden, hidden)
    w3, b3 = linear(ks[4], ks[5], hidden, hidden)
    w4, b4 = linear(ks[6], ks[7], hidden, input_shape)
    return prepare_params(
        dict(w1=w1, b1=b1, w2=w2, b2=b2, w3=w3, b3=b3, w4=w4, b4=b4))


def ae_reference(x, p):
    """Matches kernel numerics: bf16 matmul operands, f32 accumulate, f32 bias/ReLU."""
    bf16 = jnp.bfloat16

    def layer(a, w, b):
        y = jnp.dot(a.astype(bf16), w.astype(bf16), preferred_element_type=jnp.float32)
        return jnp.maximum(y + b.astype(jnp.float32), 0.0)

    h = layer(x, p["w1"], p["b1"])
    c = layer(h, p["w2"], p["b2"])
    d = layer(c, p["w3"], p["b3"])
    return layer(d, p["w4"], p["b4"])


if __name__ == "__main__":
    key = jax.random.PRNGKey(0)
    k_x, k_p = jax.random.split(key)

    B = 200            # ragged batch -> 2 grid steps at TM=112, masked final block
    INPUT_SHAPE = 256  # kwargs['input_shape'] (feature dim of flattened input)

    x = jax.random.normal(k_x, (B, INPUT_SHAPE), jnp.float32)
    params = init_params(k_p, INPUT_SHAPE, hidden=128)

    out = jax.block_until_ready(ae_forward(x, params))

    ref = ae_reference(x, params)
    assert out.shape == (B, INPUT_SHAPE)
    assert out.dtype == jnp.float32
    assert jnp.allclose(out, ref, atol=1e-3, rtol=1e-3), (
        float(jnp.max(jnp.abs(out - ref))))

    print("KERNEL_OK")
</pallas_src>

<mosaic_0001>
module attributes {stable_mosaic.version = 11 : i64} {
  func.func @ae_kernel(%arg0: i32, %arg1: memref<112x256xf32, #tpu.memory_space<vmem>>, %arg2: memref<256x128xbf16, #tpu.memory_space<vmem>>, %arg3: memref<1x128xf32, #tpu.memory_space<vmem>>, %arg4: memref<128x128xbf16, #tpu.memory_space<vmem>>, %arg5: memref<1x128xf32, #tpu.memory_space<vmem>>, %arg6: memref<128x128xbf16, #tpu.memory_space<vmem>>, %arg7: memref<1x128xf32, #tpu.memory_space<vmem>>, %arg8: memref<128x256xbf16, #tpu.memory_space<vmem>>, %arg9: memref<1x256xf32, #tpu.memory_space<vmem>>, %arg10: memref<112x256xf32, #tpu.memory_space<vmem>>) attributes {dimension_semantics = [#tpu.dimension_semantics<core_parallel>], iteration_bounds = array<i64: 2>, scalar_prefetch = 0 : i64, scratch_operands = 0 : i64, tpu.core_type = #tpu.core_type<tc>, window_params = [{transform_indices = @transform_0, window_bounds = array<i64: 112, 256>}, {pipeline_mode = #tpu.pipeline_mode<synchronous>, transform_indices = @transform_1, window_bounds = array<i64: 256, 128>}, {pipeline_mode = #tpu.pipeline_mode<synchronous>, transform_indices = @transform_2, window_bounds = array<i64: 1, 128>}, {pipeline_mode = #tpu.pipeline_mode<synchronous>, transform_indices = @transform_3, window_bounds = array<i64: 128, 128>}, {pipeline_mode = #tpu.pipeline_mode<synchronous>, transform_indices = @transform_4, window_bounds = array<i64: 1, 128>}, {pipeline_mode = #tpu.pipeline_mode<synchronous>, transform_indices = @transform_5, window_bounds = array<i64: 128, 128>}, {pipeline_mode = #tpu.pipeline_mode<synchronous>, transform_indices = @transform_6, window_bounds = array<i64: 1, 128>}, {pipeline_mode = #tpu.pipeline_mode<synchronous>, transform_indices = @transform_7, window_bounds = array<i64: 128, 256>}, {pipeline_mode = #tpu.pipeline_mode<synchronous>, transform_indices = @transform_8, window_bounds = array<i64: 1, 256>}, {transform_indices = @transform_9, window_bounds = array<i64: 112, 256>}]} {
    %c0 = arith.constant 0 : index
    %c0_0 = arith.constant 0 : index
    %0 = vector.load %arg1[%c0, %c0_0] : memref<112x256xf32, #tpu.memory_space<vmem>>, vector<112x256xf32>
    %1 = arith.truncf %0 : vector<112x256xf32> to vector<112x256xbf16>
    %c0_1 = arith.constant 0 : index
    %c0_2 = arith.constant 0 : index
    %2 = vector.load %arg2[%c0_1, %c0_2] : memref<256x128xbf16, #tpu.memory_space<vmem>>, vector<256x128xbf16>
    %cst = arith.constant dense<0.000000e+00> : vector<112x128xf32>
    %3 = tpu.matmul %1, %2, %cst {dimension_numbers = #tpu.dot_dimension_numbers<[1], [0], [0], [1], [0, 0, 1, 1], [], []>} : vector<112x256xbf16>, vector<256x128xbf16>, vector<112x128xf32> -> vector<112x128xf32>
    %c0_3 = arith.constant 0 : index
    %c0_4 = arith.constant 0 : index
    %4 = vector.load %arg3[%c0_3, %c0_4] : memref<1x128xf32, #tpu.memory_space<vmem>>, vector<1x128xf32>
    %5 = vector.broadcast %4 : vector<1x128xf32> to vector<112x128xf32>
    %6 = arith.addf %3, %5 : vector<112x128xf32>
    %cst_5 = arith.constant 0.000000e+00 : f32
    %7 = vector.broadcast %cst_5 : f32 to vector<112x128xf32>
    %8 = arith.maximumf %6, %7 : vector<112x128xf32>
    %9 = arith.truncf %8 : vector<112x128xf32> to vector<112x128xbf16>
    %c0_6 = arith.constant 0 : index
    %c0_7 = arith.constant 0 : index
    %10 = vector.load %arg4[%c0_6, %c0_7] : memref<128x128xbf16, #tpu.memory_space<vmem>>, vector<128x128xbf16>
    %cst_8 = arith.constant dense<0.000000e+00> : vector<112x128xf32>
    %11 = tpu.matmul %9, %10, %cst_8 {dimension_numbers = #tpu.dot_dimension_numbers<[1], [0], [0], [1], [0, 0, 1, 1], [], []>} : vector<112x128xbf16>, vector<128x128xbf16>, vector<112x128xf32> -> vector<112x128xf32>
    %c0_9 = arith.constant 0 : index
    %c0_10 = arith.constant 0 : index
    %12 = vector.load %arg5[%c0_9, %c0_10] : memref<1x128xf32, #tpu.memory_space<vmem>>, vector<1x128xf32>
    %13 = vector.broadcast %12 : vector<1x128xf32> to vector<112x128xf32>
    %14 = arith.addf %11, %13 : vector<112x128xf32>
    %cst_11 = arith.constant 0.000000e+00 : f32
    %15 = vector.broadcast %cst_11 : f32 to vector<112x128xf32>
    %16 = arith.maximumf %14, %15 : vector<112x128xf32>
    %17 = arith.truncf %16 : vector<112x128xf32> to vector<112x128xbf16>
    %c0_12 = arith.constant 0 : index
    %c0_13 = arith.constant 0 : index
    %18 = vector.load %arg6[%c0_12, %c0_13] : memref<128x128xbf16, #tpu.memory_space<vmem>>, vector<128x128xbf16>
    %cst_14 = arith.constant dense<0.000000e+00> : vector<112x128xf32>
    %19 = tpu.matmul %17, %18, %cst_14 {dimension_numbers = #tpu.dot_dimension_numbers<[1], [0], [0], [1], [0, 0, 1, 1], [], []>} : vector<112x128xbf16>, vector<128x128xbf16>, vector<112x128xf32> -> vector<112x128xf32>
    %c0_15 = arith.constant 0 : index
    %c0_16 = arith.constant 0 : index
    %20 = vector.load %arg7[%c0_15, %c0_16] : memref<1x128xf32, #tpu.memory_space<vmem>>, vector<1x128xf32>
    %21 = vector.broadcast %20 : vector<1x128xf32> to vector<112x128xf32>
    %22 = arith.addf %19, %21 : vector<112x128xf32>
    %cst_17 = arith.constant 0.000000e+00 : f32
    %23 = vector.broadcast %cst_17 : f32 to vector<112x128xf32>
    %24 = arith.maximumf %22, %23 : vector<112x128xf32>
    %25 = arith.truncf %24 : vector<112x128xf32> to vector<112x128xbf16>
    %c0_18 = arith.constant 0 : index
    %c0_19 = arith.constant 0 : index
    %26 = vector.load %arg8[%c0_18, %c0_19] : memref<128x256xbf16, #tpu.memory_space<vmem>>, vector<128x256xbf16>
    %cst_20 = arith.constant dense<0.000000e+00> : vector<112x256xf32>
    %27 = tpu.matmul %25, %26, %cst_20 {dimension_numbers = #tpu.dot_dimension_numbers<[1], [0], [0], [1], [0, 0, 1, 1], [], []>} : vector<112x128xbf16>, vector<128x256xbf16>, vector<112x256xf32> -> vector<112x256xf32>
    %c0_21 = arith.constant 0 : index
    %c0_22 = arith.constant 0 : index
    %28 = vector.load %arg9[%c0_21, %c0_22] : memref<1x256xf32, #tpu.memory_space<vmem>>, vector<1x256xf32>
    %29 = vector.broadcast %28 : vector<1x256xf32> to vector<112x256xf32>
    %30 = arith.addf %27, %29 : vector<112x256xf32>
    %cst_23 = arith.constant 0.000000e+00 : f32
    %31 = vector.broadcast %cst_23 : f32 to vector<112x256xf32>
    %32 = arith.maximumf %30, %31 : vector<112x256xf32>
    %c0_24 = arith.constant 0 : index
    %c0_25 = arith.constant 0 : index
    %33 = vector.load %arg10[%c0_24, %c0_25] : memref<112x256xf32, #tpu.memory_space<vmem>>, vector<112x256xf32>
    tpu.vector_store %arg10[%c0_24, %c0_25], %32 {strides = array<i32>} : memref<112x256xf32, #tpu.memory_space<vmem>>, vector<112x256xf32>,
    return
  }
  func.func @transform_0(%arg0: i32) -> (i32, i32) {
    %c0_i32 = arith.constant 0 : i32
    %c0_i32_0 = arith.constant 0 : i32
    return %arg0, %c0_i32 : i32, i32
  }
  func.func @transform_1(%arg0: i32) -> (i32, i32) {
    %c0_i32 = arith.constant 0 : i32
    %c0_i32_0 = arith.constant 0 : i32
    %c0_i32_1 = arith.constant 0 : i32
    return %c0_i32, %c0_i32_0 : i32, i32
  }
  func.func @transform_2(%arg0: i32) -> (i32, i32) {
    %c0_i32 = arith.constant 0 : i32
    %c0_i32_0 = arith.constant 0 : i32
    %c0_i32_1 = arith.constant 0 : i32
    return %c0_i32, %c0_i32_0 : i32, i32
  }
  func.func @transform_3(%arg0: i32) -> (i32, i32) {
    %c0_i32 = arith.constant 0 : i32
    %c0_i32_0 = arith.constant 0 : i32
    %c0_i32_1 = arith.constant 0 : i32
    return %c0_i32, %c0_i32_0 : i32, i32
  }
  func.func @transform_4(%arg0: i32) -> (i32, i32) {
    %c0_i32 = arith.constant 0 : i32
    %c0_i32_0 = arith.constant 0 : i32
    %c0_i32_1 = arith.constant 0 : i32
    return %c0_i32, %c0_i32_0 : i32, i32
  }
  func.func @transform_5(%arg0: i32) -> (i32, i32) {
    %c0_i32 = arith.constant 0 : i32
    %c0_i32_0 = arith.constant 0 : i32
    %c0_i32_1 = arith.constant 0 : i32
    return %c0_i32, %c0_i32_0 : i32, i32
  }
  func.func @transform_6(%arg0: i32) -> (i32, i32) {
    %c0_i32 = arith.constant 0 : i32
    %c0_i32_0 = arith.constant 0 : i32
    %c0_i32_1 = arith.constant 0 : i32
    return %c0_i32, %c0_i32_0 : i32, i32
  }
  func.func @transform_7(%arg0: i32) -> (i32, i32) {
    %c0_i32 = arith.constant 0 : i32
    %c0_i32_0 = arith.constant 0 : i32
    %c0_i32_1 = arith.constant 0 : i32
    return %c0_i32, %c0_i32_0 : i32, i32
  }
  func.func @transform_8(%arg0: i32) -> (i32, i32) {
    %c0_i32 = arith.constant 0 : i32
    %c0_i32_0 = arith.constant 0 : i32
    %c0_i32_1 = arith.constant 0 : i32
    return %c0_i32, %c0_i32_0 : i32, i32
  }
  func.func @transform_9(%arg0: i32) -> (i32, i32) {
    %c0_i32 = arith.constant 0 : i32
    %c0_i32_0 = arith.constant 0 : i32
    return %arg0, %c0_i32 : i32, i32
  }
}

module attributes {stable_mosaic.version = 11 : i64} {
  func.func @ae_kernel(%arg0: i32, %arg1: memref<112x256xf32, #tpu.memory_space<vmem>>, %arg2: memref<256x128xbf16, #tpu.memory_space<vmem>>, %arg3: memref<1x128xf32, #tpu.memory_space<vmem>>, %arg4: memref<128x128xbf16, #tpu.memory_space<vmem>>, %arg5: memref<1x128xf32, #tpu.memory_space<vmem>>, %arg6: memref<128x128xbf16, #tpu.memory_space<vmem>>, %arg7: memref<1x128xf32, #tpu.memory_space<vmem>>, %arg8: memref<128x256xbf16, #tpu.memory_space<vmem>>, %arg9: memref<1x256xf32, #tpu.memory_space<vmem>>, %arg10: memref<112x256xf32, #tpu.memory_space<vmem>>) attributes {dimension_semantics = [#tpu.dimension_semantics<parallel>], iteration_bounds = array<i64: 2>, scalar_prefetch = 0 : i64, scratch_operands = 0 : i64, tpu.core_type = #tpu.core_type<tc>, window_params = [{transform_indices = @transform_0, window_bounds = array<i64: 112, 256>}, {pipeline_mode = #tpu.pipeline_mode<synchronous>, transform_indices = @transform_1, window_bounds = array<i64: 256, 128>}, {pipeline_mode = #tpu.pipeline_mode<synchronous>, transform_indices = @transform_2, window_bounds = array<i64: 1, 128>}, {pipeline_mode = #tpu.pipeline_mode<synchronous>, transform_indices = @transform_3, window_bounds = array<i64: 128, 128>}, {pipeline_mode = #tpu.pipeline_mode<synchronous>, transform_indices = @transform_4, window_bounds = array<i64: 1, 128>}, {pipeline_mode = #tpu.pipeline_mode<synchronous>, transform_indices = @transform_5, window_bounds = array<i64: 128, 128>}, {pipeline_mode = #tpu.pipeline_mode<synchronous>, transform_indices = @transform_6, window_bounds = array<i64: 1, 128>}, {pipeline_mode = #tpu.pipeline_mode<synchronous>, transform_indices = @transform_7, window_bounds = array<i64: 128, 256>}, {pipeline_mode = #tpu.pipeline_mode<synchronous>, transform_indices = @transform_8, window_bounds = array<i64: 1, 256>}, {transform_indices = @transform_9, window_bounds = array<i64: 112, 256>}]} {
    %c0 = arith.constant 0 : index
    %c0_0 = arith.constant 0 : index
    %0 = vector.load %arg1[%c0, %c0_0] : memref<112x256xf32, #tpu.memory_space<vmem>>, vector<112x256xf32>
    %1 = arith.truncf %0 : vector<112x256xf32> to vector<112x256xbf16>
    %c0_1 = arith.constant 0 : index
    %c0_2 = arith.constant 0 : index
    %2 = vector.load %arg2[%c0_1, %c0_2] : memref<256x128xbf16, #tpu.memory_space<vmem>>, vector<256x128xbf16>
    %cst = arith.constant dense<0.000000e+00> : vector<112x128xf32>
    %3 = tpu.matmul %1, %2, %cst {dimension_numbers = #tpu.dot_dimension_numbers<[1], [0], [0], [1], [0, 0, 1, 1], [], []>} : vector<112x256xbf16>, vector<256x128xbf16>, vector<112x128xf32> -> vector<112x128xf32>
    %c0_3 = arith.constant 0 : index
    %c0_4 = arith.constant 0 : index
    %4 = vector.load %arg3[%c0_3, %c0_4] : memref<1x128xf32, #tpu.memory_space<vmem>>, vector<1x128xf32>
    %5 = vector.broadcast %4 : vector<1x128xf32> to vector<112x128xf32>
    %6 = arith.addf %3, %5 : vector<112x128xf32>
    %cst_5 = arith.constant 0.000000e+00 : f32
    %7 = vector.broadcast %cst_5 : f32 to vector<112x128xf32>
    %8 = arith.maximumf %6, %7 : vector<112x128xf32>
    %9 = arith.truncf %8 : vector<112x128xf32> to vector<112x128xbf16>
    %c0_6 = arith.constant 0 : index
    %c0_7 = arith.constant 0 : index
    %10 = vector.load %arg4[%c0_6, %c0_7] : memref<128x128xbf16, #tpu.memory_space<vmem>>, vector<128x128xbf16>
    %cst_8 = arith.constant dense<0.000000e+00> : vector<112x128xf32>
    %11 = tpu.matmul %9, %10, %cst_8 {dimension_numbers = #tpu.dot_dimension_numbers<[1], [0], [0], [1], [0, 0, 1, 1], [], []>} : vector<112x128xbf16>, vector<128x128xbf16>, vector<112x128xf32> -> vector<112x128xf32>
    %c0_9 = arith.constant 0 : index
    %c0_10 = arith.constant 0 : index
    %12 = vector.load %arg5[%c0_9, %c0_10] : memref<1x128xf32, #tpu.memory_space<vmem>>, vector<1x128xf32>
    %13 = vector.broadcast %12 : vector<1x128xf32> to vector<112x128xf32>
    %14 = arith.addf %11, %13 : vector<112x128xf32>
    %cst_11 = arith.constant 0.000000e+00 : f32
    %15 = vector.broadcast %cst_11 : f32 to vector<112x128xf32>
    %16 = arith.maximumf %14, %15 : vector<112x128xf32>
    %17 = arith.truncf %16 : vector<112x128xf32> to vector<112x128xbf16>
    %c0_12 = arith.constant 0 : index
    %c0_13 = arith.constant 0 : index
    %18 = vector.load %arg6[%c0_12, %c0_13] : memref<128x128xbf16, #tpu.memory_space<vmem>>, vector<128x128xbf16>
    %cst_14 = arith.constant dense<0.000000e+00> : vector<112x128xf32>
    %19 = tpu.matmul %17, %18, %cst_14 {dimension_numbers = #tpu.dot_dimension_numbers<[1], [0], [0], [1], [0, 0, 1, 1], [], []>} : vector<112x128xbf16>, vector<128x128xbf16>, vector<112x128xf32> -> vector<112x128xf32>
    %c0_15 = arith.constant 0 : index
    %c0_16 = arith.constant 0 : index
    %20 = vector.load %arg7[%c0_15, %c0_16] : memref<1x128xf32, #tpu.memory_space<vmem>>, vector<1x128xf32>
    %21 = vector.broadcast %20 : vector<1x128xf32> to vector<112x128xf32>
    %22 = arith.addf %19, %21 : vector<112x128xf32>
    %cst_17 = arith.constant 0.000000e+00 : f32
    %23 = vector.broadcast %cst_17 : f32 to vector<112x128xf32>
    %24 = arith.maximumf %22, %23 : vector<112x128xf32>
    %25 = arith.truncf %24 : vector<112x128xf32> to vector<112x128xbf16>
    %c0_18 = arith.constant 0 : index
    %c0_19 = arith.constant 0 : index
    %26 = vector.load %arg8[%c0_18, %c0_19] : memref<128x256xbf16, #tpu.memory_space<vmem>>, vector<128x256xbf16>
    %cst_20 = arith.constant dense<0.000000e+00> : vector<112x256xf32>
    %27 = tpu.matmul %25, %26, %cst_20 {dimension_numbers = #tpu.dot_dimension_numbers<[1], [0], [0], [1], [0, 0, 1, 1], [], []>} : vector<112x128xbf16>, vector<128x256xbf16>, vector<112x256xf32> -> vector<112x256xf32>
    %c0_21 = arith.constant 0 : index
    %c0_22 = arith.constant 0 : index
    %28 = vector.load %arg9[%c0_21, %c0_22] : memref<1x256xf32, #tpu.memory_space<vmem>>, vector<1x256xf32>
    %29 = vector.broadcast %28 : vector<1x256xf32> to vector<112x256xf32>
    %30 = arith.addf %27, %29 : vector<112x256xf32>
    %cst_23 = arith.constant 0.000000e+00 : f32
    %31 = vector.broadcast %cst_23 : f32 to vector<112x256xf32>
    %32 = arith.maximumf %30, %31 : vector<112x256xf32>
    %c0_24 = arith.constant 0 : index
    %c0_25 = arith.constant 0 : index
    %33 = vector.load %arg10[%c0_24, %c0_25] : memref<112x256xf32, #tpu.memory_space<vmem>>, vector<112x256xf32>
    tpu.vector_store %arg10[%c0_24, %c0_25], %32 {strides = array<i32>} : memref<112x256xf32, #tpu.memory_space<vmem>>, vector<112x256xf32>,
    return
  }
  func.func @transform_0(%arg0: i32) -> (i32, i32) {
    %c0_i32 = arith.constant 0 : i32
    %c0_i32_0 = arith.constant 0 : i32
    return %arg0, %c0_i32 : i32, i32
  }
  func.func @transform_1(%arg0: i32) -> (i32, i32) {
    %c0_i32 = arith.constant 0 : i32
    %c0_i32_0 = arith.constant 0 : i32
    %c0_i32_1 = arith.constant 0 : i32
    return %c0_i32, %c0_i32_0 : i32, i32
  }
  func.func @transform_2(%arg0: i32) -> (i32, i32) {
    %c0_i32 = arith.constant 0 : i32
    %c0_i32_0 = arith.constant 0 : i32
    %c0_i32_1 = arith.constant 0 : i32
    return %c0_i32, %c0_i32_0 : i32, i32
  }
  func.func @transform_3(%arg0: i32) -> (i32, i32) {
    %c0_i32 = arith.constant 0 : i32
    %c0_i32_0 = arith.constant 0 : i32
    %c0_i32_1 = arith.constant 0 : i32
    return %c0_i32, %c0_i32_0 : i32, i32
  }
  func.func @transform_4(%arg0: i32) -> (i32, i32) {
    %c0_i32 = arith.constant 0 : i32
    %c0_i32_0 = arith.constant 0 : i32
    %c0_i32_1 = arith.constant 0 : i32
    return %c0_i32, %c0_i32_0 : i32, i32
  }
  func.func @transform_5(%arg0: i32) -> (i32, i32) {
    %c0_i32 = arith.constant 0 : i32
    %c0_i32_0 = arith.constant 0 : i32
    %c0_i32_1 = arith.constant 0 : i32
    return %c0_i32, %c0_i32_0 : i32, i32
  }
  func.func @transform_6(%arg0: i32) -> (i32, i32) {
    %c0_i32 = arith.constant 0 : i32
    %c0_i32_0 = arith.constant 0 : i32
    %c0_i32_1 = arith.constant 0 : i32
    return %c0_i32, %c0_i32_0 : i32, i32
  }
  func.func @transform_7(%arg0: i32) -> (i32, i32) {
    %c0_i32 = arith.constant 0 : i32
    %c0_i32_0 = arith.constant 0 : i32
    %c0_i32_1 = arith.constant 0 : i32
    return %c0_i32, %c0_i32_0 : i32, i32
  }
  func.func @transform_8(%arg0: i32) -> (i32, i32) {
    %c0_i32 = arith.constant 0 : i32
    %c0_i32_0 = arith.constant 0 : i32
    %c0_i32_1 = arith.constant 0 : i32
    return %c0_i32, %c0_i32_0 : i32, i32
  }
  func.func @transform_9(%arg0: i32) -> (i32, i32) {
    %c0_i32 = arith.constant 0 : i32
    %c0_i32_0 = arith.constant 0 : i32
    return %arg0, %c0_i32 : i32, i32
  }
}

</mosaic_0001>

<llo_original>
// kernel: tpu_custom_call.1
$region0: #{tpu_custom_call.1}
  #allocation0 [shape = 'u32[]', space=smem, size = 0x4, offset = 0x4, fixed_abs, tag = 'smem constant byte address 0x4 - core index']
  #allocation1 [shape = 'u32[144,128]{1,0:T(1,128)}', space=vmem, size = 0x12000, scoped, tag = 'internal scratch']
  %s0 = inlined_call_operand.hbm [shape: f32[200,256], index: 0, kind: input, shape index: {}]
  %s1 = inlined_call_operand.hbm [shape: bf16[256,128], index: 1, kind: input, shape index: {}]
  %s2 = inlined_call_operand.vmem [shape: f32[1,128], index: 2, kind: input, shape index: {}]
  %s3 = inlined_call_operand.hbm [shape: bf16[128,128], index: 3, kind: input, shape index: {}]
  %s4 = inlined_call_operand.vmem [shape: f32[1,128], index: 4, kind: input, shape index: {}]
  %s5 = inlined_call_operand.hbm [shape: bf16[128,128], index: 5, kind: input, shape index: {}]
  %s6 = inlined_call_operand.vmem [shape: f32[1,128], index: 6, kind: input, shape index: {}]
  %s7 = inlined_call_operand.hbm [shape: bf16[128,256], index: 7, kind: input, shape index: {}]
  %s8 = inlined_call_operand.vmem [shape: f32[1,256], index: 8, kind: input, shape index: {}]
  %s9 = inlined_call_operand.hbm [shape: f32[200,256], index: 9, kind: output, shape index: {}]
  %s10 = sld [smem:[#allocation0]]
  $region89: #{tpu_custom_call.1} parent=0
    _
  %s12 = ssub.s32 1, %s10
  %s13 = scalar_select 0, %s12, %s10
  $region1: #{tpu_custom_call.1} parent=0
    #allocation2 [shape = 'u8[229376]{0}', space=vmem, size = 0x38000, scoped, tag = 'input window, operand 0']
    #allocation3 [shape = 's32[2]{0}', space=sflag, size = 0x8, scoped, tag = 'scoped memory for tpu_custom_call.1']
    #allocation4 [shape = 's32[2]{0}', space=sflag, size = 0x8, scoped, tag = 'scoped memory for tpu_custom_call.1']
    #allocation5 [shape = 'u8[65536]{0}', space=vmem, size = 0x10000, scoped, tag = 'input window, operand 1, single buffered']
    #allocation6 [shape = 's32[1]{0}', space=sflag, size = 0x4, scoped, tag = 'scoped memory for tpu_custom_call.1']
    #allocation7 [shape = 'u8[32768]{0}', space=vmem, size = 0x8000, scoped, tag = 'input window, operand 3, single buffered']
    #allocation8 [shape = 'u8[32768]{0}', space=vmem, size = 0x8000, scoped, tag = 'input window, operand 5, single buffered']
    #allocation9 [shape = 's32[1]{0}', space=sflag, size = 0x4, scoped, tag = 'scoped memory for tpu_custom_call.1']
    #allocation10 [shape = 'u8[65536]{0}', space=vmem, size = 0x10000, scoped, tag = 'input window, operand 7, single buffered']
    #allocation11 [shape = 'u8[229376]{0}', space=vmem, size = 0x38000, scoped, tag = 'output window, operand 0']
    %14 = vsyncpa [#allocation3], 0
    %s15 = scalar_lea.sflag [#allocation3], 1
    %16 = vsyncpa %s15, 0
    %17 = vsyncpa [#allocation6], 0
    %18 = vsyncpa [#allocation9], 0
    %19 = vsyncpa [#allocation4], 0
    %s20 = scalar_lea.sflag [#allocation4], 1
    %21 = vsyncpa %s20, 0
    loop: start=0, step=1, limit=4
    $region2: #{tpu_custom_call.1} parent=1 // loop_pre_header
      _
    $region3: #{tpu_custom_call.1} parent=1 // loop_header
      %s23 = sphi 0, %s27
      %p24 = scmp.ge.s32.totalorder %s23, 4
      %s33 = sphi 0, %s35
      %s36 = sphi 0, %s33
      %s37 = sphi 0, %s36
      %s53 = sphi 0, %s37
      %s57 = sphi 0, %s57
      %s59 = sphi 0, %s57
      %s60 = sphi 0, %s59
      %s74 = sphi 0, %s60
      %s78 = sphi 0, %s78
      %s80 = sphi 0, %s78
      %s81 = sphi 0, %s80
      %s95 = sphi 0, %s81
      %s99 = sphi 0, %s99
      %s101 = sphi 0, %s99
      %s102 = sphi 0, %s101
      %s116 = sphi 0, %s102
      %s120 = sphi 0, %s120
      %s122 = sphi 0, %s120
      %s123 = sphi 0, %s122
      %s137 = sphi 0, %s123
      %s141 = sphi 0, %s141
      %s143 = sphi 0, %s141
      %s144 = sphi 0, %s143
      %s158 = sphi 0, %s144
      %s162 = sphi 0, %s162
      %s164 = sphi 0, %s162
      %s165 = sphi 0, %s164
      %s179 = sphi 0, %s165
      %s183 = sphi 0, %s183
      %s185 = sphi 0, %s183
      %s186 = sphi 0, %s185
      %s200 = sphi 0, %s186
      %s204 = sphi 0, %s204
      %s206 = sphi 0, %s204
      %s207 = sphi 0, %s206
      %s221 = sphi 0, %s207
      %s227 = sphi 0, %s229
      %s230 = sphi 0, %s227
      %s231 = sphi 0, %s230
      %s247 = sphi 0, %s231
    $region4: #{tpu_custom_call.1} parent=1 // loop_header_branch
      %26 = sbr.rel (%p24) target = $region8
    $region5: #{tpu_custom_call.1} parent=1 // loop_body
      %s28 = ssub.s32 %s23, 1
      %s29 = ssub.s32 %s23, 2
      %s30 = sadd.s32 %s23, 1
      %s31 = ssub.s32 %s23, %s30
      %p32 = scmp.eq.s32.totalorder %s31, 0
      %s34 = sadd.s32 %s33, 1
      %s35 = scalar_select %p32, %s33, %s34
      %p38 = pneg %p32
      %p39 = scmp.eq.s32.totalorder %s23, 1
      %p40 = por %p38, %p39
      %p41 = scmp.ne.s32.totalorder %s33, %s36
      %p42 = scmp.eq.s32.totalorder %s23, 0
      %p43 = por %p41, %p42
      %p44 = scmp.ne.s32.totalorder %s33, %s36
      %p45 = scmp.eq.s32.totalorder %s28, 1
      %p46 = por %p44, %p45
      %p47 = scmp.ne.s32.totalorder %s36, %s37
      %p48 = scmp.eq.s32.totalorder %s28, 0
      %p49 = por %p47, %p48
      %p50 = scmp.ne.s32.totalorder %s36, %s37
      %p51 = scmp.eq.s32.totalorder %s29, 1
      %p52 = por %p50, %p51
      %p54 = scmp.ne.s32.totalorder %s37, %s53
      %p55 = scmp.eq.s32.totalorder %s29, 0
      %p56 = por %p54, %p55
      %s58 = sadd.s32 %s57, 1
      %p61 = scmp.eq.s32.totalorder %s23, 1
      %p62 = scmp.ne.s32.totalorder %s57, %s59
      %p63 = scmp.eq.s32.totalorder %s23, 0
      %p64 = por %p62, %p63
      %p65 = scmp.ne.s32.totalorder %s57, %s59
      %p66 = scmp.eq.s32.totalorder %s28, 1
      %p67 = por %p65, %p66
      %p68 = scmp.ne.s32.totalorder %s59, %s60
      %p69 = scmp.eq.s32.totalorder %s28, 0
      %p70 = por %p68, %p69
      %p71 = scmp.ne.s32.totalorder %s59, %s60
      %p72 = scmp.eq.s32.totalorder %s29, 1
      %p73 = por %p71, %p72
      %p75 = scmp.ne.s32.totalorder %s60, %s74
      %p76 = scmp.eq.s32.totalorder %s29, 0
      %p77 = por %p75, %p76
      %s79 = sadd.s32 %s78, 1
      %p82 = scmp.eq.s32.totalorder %s23, 1
      %p83 = scmp.ne.s32.totalorder %s78, %s80
      %p84 = scmp.eq.s32.totalorder %s23, 0
      %p85 = por %p83, %p84
      %p86 = scmp.ne.s32.totalorder %s78, %s80
      %p87 = scmp.eq.s32.totalorder %s28, 1
      %p88 = por %p86, %p87
      %p89 = scmp.ne.s32.totalorder %s80, %s81
      %p90 = scmp.eq.s32.totalorder %s28, 0
      %p91 = por %p89, %p90
      %p92 = scmp.ne.s32.totalorder %s80, %s81
      %p93 = scmp.eq.s32.totalorder %s29, 1
      %p94 = por %p92, %p93
      %p96 = scmp.ne.s32.totalorder %s81, %s95
      %p97 = scmp.eq.s32.totalorder %s29, 0
      %p98 = por %p96, %p97
      %s100 = sadd.s32 %s99, 1
      %p103 = scmp.eq.s32.totalorder %s23, 1
      %p104 = scmp.ne.s32.totalorder %s99, %s101
      %p105 = scmp.eq.s32.totalorder %s23, 0
      %p106 = por %p104, %p105
      %p107 = scmp.ne.s32.totalorder %s99, %s101
      %p108 = scmp.eq.s32.totalorder %s28, 1
      %p109 = por %p107, %p108
      %p110 = scmp.ne.s32.totalorder %s101, %s102
      %p111 = scmp.eq.s32.totalorder %s28, 0
      %p112 = por %p110, %p111
      %p113 = scmp.ne.s32.totalorder %s101, %s102
      %p114 = scmp.eq.s32.totalorder %s29, 1
      %p115 = por %p113, %p114
      %p117 = scmp.ne.s32.totalorder %s102, %s116
      %p118 = scmp.eq.s32.totalorder %s29, 0
      %p119 = por %p117, %p118
      %s121 = sadd.s32 %s120, 1
      %p124 = scmp.eq.s32.totalorder %s23, 1
      %p125 = scmp.ne.s32.totalorder %s120, %s122
      %p126 = scmp.eq.s32.totalorder %s23, 0
      %p127 = por %p125, %p126
      %p128 = scmp.ne.s32.totalorder %s120, %s122
      %p129 = scmp.eq.s32.totalorder %s28, 1
      %p130 = por %p128, %p129
      %p131 = scmp.ne.s32.totalorder %s122, %s123
      %p132 = scmp.eq.s32.totalorder %s28, 0
      %p133 = por %p131, %p132
      %p134 = scmp.ne.s32.totalorder %s122, %s123
      %p135 = scmp.eq.s32.totalorder %s29, 1
      %p136 = por %p134, %p135
      %p138 = scmp.ne.s32.totalorder %s123, %s137
      %p139 = scmp.eq.s32.totalorder %s29, 0
      %p140 = por %p138, %p139
      %s142 = sadd.s32 %s141, 1
      %p145 = scmp.eq.s32.totalorder %s23, 1
      %p146 = scmp.ne.s32.totalorder %s141, %s143
      %p147 = scmp.eq.s32.totalorder %s23, 0
      %p148 = por %p146, %p147
      %p149 = scmp.ne.s32.totalorder %s141, %s143
      %p150 = scmp.eq.s32.totalorder %s28, 1
      %p151 = por %p149, %p150
      %p152 = scmp.ne.s32.totalorder %s143, %s144
      %p153 = scmp.eq.s32.totalorder %s28, 0
      %p154 = por %p152, %p153
      %p155 = scmp.ne.s32.totalorder %s143, %s144
      %p156 = scmp.eq.s32.totalorder %s29, 1
      %p157 = por %p155, %p156
      %p159 = scmp.ne.s32.totalorder %s144, %s158
      %p160 = scmp.eq.s32.totalorder %s29, 0
      %p161 = por %p159, %p160
      %s163 = sadd.s32 %s162, 1
      %p166 = scmp.eq.s32.totalorder %s23, 1
      %p167 = scmp.ne.s32.totalorder %s162, %s164
      %p168 = scmp.eq.s32.totalorder %s23, 0
      %p169 = por %p167, %p168
      %p170 = scmp.ne.s32.totalorder %s162, %s164
      %p171 = scmp.eq.s32.totalorder %s28, 1
      %p172 = por %p170, %p171
      %p173 = scmp.ne.s32.totalorder %s164, %s165
      %p174 = scmp.eq.s32.totalorder %s28, 0
      %p175 = por %p173, %p174
      %p176 = scmp.ne.s32.totalorder %s164, %s165
      %p177 = scmp.eq.s32.totalorder %s29, 1
      %p178 = por %p176, %p177
      %p180 = scmp.ne.s32.totalorder %s165, %s179
      %p181 = scmp.eq.s32.totalorder %s29, 0
      %p182 = por %p180, %p181
      %s184 = sadd.s32 %s183, 1
      %p187 = scmp.eq.s32.totalorder %s23, 1
      %p188 = scmp.ne.s32.totalorder %s183, %s185
      %p189 = scmp.eq.s32.totalorder %s23, 0
      %p190 = por %p188, %p189
      %p191 = scmp.ne.s32.totalorder %s183, %s185
      %p192 = scmp.eq.s32.totalorder %s28, 1
      %p193 = por %p191, %p192
      %p194 = scmp.ne.s32.totalorder %s185, %s186
      %p195 = scmp.eq.s32.totalorder %s28, 0
      %p196 = por %p194, %p195
      %p197 = scmp.ne.s32.totalorder %s185, %s186
      %p198 = scmp.eq.s32.totalorder %s29, 1
      %p199 = por %p197, %p198
      %p201 = scmp.ne.s32.totalorder %s186, %s200
      %p202 = scmp.eq.s32.totalorder %s29, 0
      %p203 = por %p201, %p202
      %s205 = sadd.s32 %s204, 1
      %p208 = scmp.eq.s32.totalorder %s23, 1
      %p209 = scmp.ne.s32.totalorder %s204, %s206
      %p210 = scmp.eq.s32.totalorder %s23, 0
      %p211 = por %p209, %p210
      %p212 = scmp.ne.s32.totalorder %s204, %s206
      %p213 = scmp.eq.s32.totalorder %s28, 1
      %p214 = por %p212, %p213
      %p215 = scmp.ne.s32.totalorder %s206, %s207
      %p216 = scmp.eq.s32.totalorder %s28, 0
      %p217 = por %p215, %p216
      %p218 = scmp.ne.s32.totalorder %s206, %s207
      %p219 = scmp.eq.s32.totalorder %s29, 1
      %p220 = por %p218, %p219
      %p222 = scmp.ne.s32.totalorder %s207, %s221
      %p223 = scmp.eq.s32.totalorder %s29, 0
      %p224 = por %p222, %p223
      %s225 = ssub.s32 %s23, %s30
      %p226 = scmp.eq.s32.totalorder %s225, 0
      %s228 = sadd.s32 %s227, 1
      %s229 = scalar_select %p226, %s227, %s228
      %p232 = pneg %p226
      %p233 = scmp.eq.s32.totalorder %s23, 1
      %p234 = por %p232, %p233
      %p235 = scmp.ne.s32.totalorder %s227, %s230
      %p236 = scmp.eq.s32.totalorder %s23, 0
      %p237 = por %p235, %p236
      %p238 = scmp.ne.s32.totalorder %s227, %s230
      %p239 = scmp.eq.s32.totalorder %s28, 1
      %p240 = por %p238, %p239
      %p241 = scmp.ne.s32.totalorder %s230, %s231
      %p242 = scmp.eq.s32.totalorder %s28, 0
      %p243 = por %p241, %p242
      %p244 = scmp.ne.s32.totalorder %s230, %s231
      %p245 = scmp.eq.s32.totalorder %s29, 1
      %p246 = por %p244, %p245
      %p248 = scmp.ne.s32.totalorder %s231, %s247
      %p249 = scmp.eq.s32.totalorder %s29, 0
      %p250 = por %p248, %p249
      %p251 = scmp.le.s32.totalorder 1, %s23
      %p252 = scmp.lt.s32.totalorder %s23, 3
      %p253 = pnand %p251, %p252
      %p254 = pneg %p253
      // Predicated region
      $region9: #{tpu_custom_call.1} parent=5 // pred_check
        _
      $region10: #{tpu_custom_call.1} parent=5 // pred_check_branch
        %256 = sbr.rel (%p253) target = $region12
      $region11: #{tpu_custom_call.1} parent=5 // pred_region
        %s257 = ssub.s32 %s23, 1
        // Predicated region
        $region13: #{tpu_custom_call.1} parent=11 // pred_check
          %p258 = pneg %p70
        $region14: #{tpu_custom_call.1} parent=11 // pred_check_branch
          %260 = sbr.rel (%p258) target = $region16
        $region15: #{tpu_custom_call.1} parent=11 // pred_region
          %s262 = ssub.s32 2048, 2048
          %263 = vsyncadd [#allocation6], %s262
          %s264 = sshll.u32 [#allocation5], 4
          %s265 = int_to_ptr.vmem [resolvable:$true] %s264
          %270 = dma.hbm_to_vmem [thread:$0]  %s1, 2048, %s265, [#allocation6], 64, 64, 4
        $region16: #{tpu_custom_call.1} parent=11 // pred_fallthru
          _
        // Predicated region
        $region17: #{tpu_custom_call.1} parent=11 // pred_check
          %p271 = pneg %p91
        $region18: #{tpu_custom_call.1} parent=11 // pred_check_branch
          %273 = sbr.rel (%p271) target = $region20
        $region19: #{tpu_custom_call.1} parent=11 // pred_region
          _
        $region20: #{tpu_custom_call.1} parent=11 // pred_fallthru
          _
        // Predicated region
        $region21: #{tpu_custom_call.1} parent=11 // pred_check
          %p274 = pneg %p112
        $region22: #{tpu_custom_call.1} parent=11 // pred_check_branch
          %276 = sbr.rel (%p274) target = $region24
        $region23: #{tpu_custom_call.1} parent=11 // pred_region
          %s278 = ssub.s32 1024, 1024
          %279 = vsyncadd [#allocation6], %s278
          %s280 = sshll.u32 [#allocation7], 4
          %s281 = int_to_ptr.vmem [resolvable:$true] %s280
          %286 = dma.hbm_to_vmem [thread:$0]  %s3, 1024, %s281, [#allocation6], 64, 64, 4
        $region24: #{tpu_custom_call.1} parent=11 // pred_fallthru
          _
        // Predicated region
        $region25: #{tpu_custom_call.1} parent=11 // pred_check
          %p287 = pneg %p133
        $region26: #{tpu_custom_call.1} parent=11 // pred_check_branch
          %289 = sbr.rel (%p287) target = $region28
        $region27: #{tpu_custom_call.1} parent=11 // pred_region
          _
        $region28: #{tpu_custom_call.1} parent=11 // pred_fallthru
          _
        // Predicated region
        $region29: #{tpu_custom_call.1} parent=11 // pred_check
          %p290 = pneg %p154
        $region30: #{tpu_custom_call.1} parent=11 // pred_check_branch
          %292 = sbr.rel (%p290) target = $region32
        $region31: #{tpu_custom_call.1} parent=11 // pred_region
          %s294 = ssub.s32 1024, 1024
          %295 = vsyncadd [#allocation9], %s294
          %s296 = sshll.u32 [#allocation8], 4
          %s297 = int_to_ptr.vmem [resolvable:$true] %s296
          %302 = dma.hbm_to_vmem [thread:$0]  %s5, 1024, %s297, [#allocation9], 64, 64, 4
        $region32: #{tpu_custom_call.1} parent=11 // pred_fallthru
          _
        // Predicated region
        $region33: #{tpu_custom_call.1} parent=11 // pred_check
          %p303 = pneg %p175
        $region34: #{tpu_custom_call.1} parent=11 // pred_check_branch
          %305 = sbr.rel (%p303) target = $region36
        $region35: #{tpu_custom_call.1} parent=11 // pred_region
          _
        $region36: #{tpu_custom_call.1} parent=11 // pred_fallthru
          _
        // Predicated region
        $region37: #{tpu_custom_call.1} parent=11 // pred_check
          %p306 = pneg %p196
        $region38: #{tpu_custom_call.1} parent=11 // pred_check_branch
          %308 = sbr.rel (%p306) target = $region40
        $region39: #{tpu_custom_call.1} parent=11 // pred_region
          %s310 = ssub.s32 2048, 2048
          %311 = vsyncadd [#allocation9], %s310
          %s312 = sshll.u32 [#allocation10], 4
          %s313 = int_to_ptr.vmem [resolvable:$true] %s312
          %318 = dma.hbm_to_vmem [thread:$0]  %s7, 2048, %s313, [#allocation9], 128, 128, 8
        $region40: #{tpu_custom_call.1} parent=11 // pred_fallthru
          _
        // Predicated region
        $region41: #{tpu_custom_call.1} parent=11 // pred_check
          %p319 = pneg %p217
        $region42: #{tpu_custom_call.1} parent=11 // pred_check_branch
          %321 = sbr.rel (%p319) target = $region44
        $region43: #{tpu_custom_call.1} parent=11 // pred_region
          _
        $region44: #{tpu_custom_call.1} parent=11 // pred_fallthru
          _
      $region12: #{tpu_custom_call.1} parent=5 // pred_fallthru
        _
      %p322 = scmp.lt.s32.totalorder %s23, 2
      // Predicated region
      $region45: #{tpu_custom_call.1} parent=5 // pred_check
        %p323 = pneg %p322
      $region46: #{tpu_custom_call.1} parent=5 // pred_check_branch
        %325 = sbr.rel (%p323) target = $region48
      $region47: #{tpu_custom_call.1} parent=5 // pred_region
        // Predicated region
        $region49: #{tpu_custom_call.1} parent=47 // pred_check
          %p326 = pneg %p43
        $region50: #{tpu_custom_call.1} parent=47 // pred_check_branch
          %328 = sbr.rel (%p326) target = $region52
        $region51: #{tpu_custom_call.1} parent=47 // pred_region
          %s329 = sand.u32 %s33, 1
          %s330 = scalar_lea.sflag [#allocation3], %s329
          %s331 = sand.u32 %s33, 1
          %s332 = smul.addr %s331, 224
          %s333 = scalar_lea.vmem [#allocation2], %s332
          %s334 = smul.u32 14, %s23
          %s335 = ssub.s32 25, %s334
          %p336 = scmp.lt.s32.totalorder %s335, 14
          %s337 = scalar_select %p336, %s335, 14
          %s338 = smul.u32 128, %s337
          %s339 = smul.u32 %s338, 2
          %s341 = ssub.s32 3584, %s339
          %342 = vsyncadd %s330, %s341
          %p343 = scmp.ne.s32.totalorder 0, %s339
          %s344 = smul.addr %s334, 2
          %s345 = smul.addr %s344, 128
          %s346 = scalar_lea.hbm %s0, %s345
          %s347 = smul.u32 16, %s337
          %s348 = sshll.u32 %s333, 4
          %s349 = int_to_ptr.vmem [resolvable:$true] %s348
          %s350 = sshll.u32 %s347, 4
          %354 = dma.hbm_to_vmem [thread:$0]  (%p343), %s346, %s350, %s349, %s330, 256, 256, 16
        $region52: #{tpu_custom_call.1} parent=47 // pred_fallthru
          _
      $region48: #{tpu_custom_call.1} parent=5 // pred_fallthru
        _
      %p355 = scmp.le.s32.totalorder 1, %s23
      %p356 = scmp.lt.s32.totalorder %s23, 3
      %p357 = pnand %p355, %p356
      %p358 = pneg %p357
      // Predicated region
      $region53: #{tpu_custom_call.1} parent=5 // pred_check
        _
      $region54: #{tpu_custom_call.1} parent=5 // pred_check_branch
        %360 = sbr.rel (%p357) target = $region56
      $region55: #{tpu_custom_call.1} parent=5 // pred_region
        %s361 = ssub.s32 %s23, 1
        %s362 = sand.u32 %s36, 1
        %s363 = scalar_lea.sflag [#allocation3], %s362
        %s364 = sand.u32 %s36, 1
        %s365 = smul.addr %s364, 224
        %s366 = scalar_lea.vmem [#allocation2], %s365
        // Predicated region
        $region57: #{tpu_custom_call.1} parent=55 // pred_check
          %p367 = pneg %p49
        $region58: #{tpu_custom_call.1} parent=55 // pred_check_branch
          %369 = sbr.rel (%p367) target = $region60
        $region59: #{tpu_custom_call.1} parent=55 // pred_region
          %370 = dma.done %s363, 3584
        $region60: #{tpu_custom_call.1} parent=55 // pred_fallthru
          _
        // Predicated region
        $region61: #{tpu_custom_call.1} parent=55 // pred_check
          %p371 = pneg %p70
        $region62: #{tpu_custom_call.1} parent=55 // pred_check_branch
          %373 = sbr.rel (%p371) target = $region64
        $region63: #{tpu_custom_call.1} parent=55 // pred_region
          %374 = dma.done [#allocation6], 2048
        $region64: #{tpu_custom_call.1} parent=55 // pred_fallthru
          _
        // Predicated region
        $region65: #{tpu_custom_call.1} parent=55 // pred_check
          %p375 = pneg %p112
        $region66: #{tpu_custom_call.1} parent=55 // pred_check_branch
          %377 = sbr.rel (%p375) target = $region68
        $region67: #{tpu_custom_call.1} parent=55 // pred_region
          %378 = dma.done [#allocation6], 1024
        $region68: #{tpu_custom_call.1} parent=55 // pred_fallthru
          _
        // Predicated region
        $region69: #{tpu_custom_call.1} parent=55 // pred_check
          %p379 = pneg %p154
        $region70: #{tpu_custom_call.1} parent=55 // pred_check_branch
          %381 = sbr.rel (%p379) target = $region72
        $region71: #{tpu_custom_call.1} parent=55 // pred_region
          %382 = dma.done [#allocation9], 1024
        $region72: #{tpu_custom_call.1} parent=55 // pred_fallthru
          _
        // Predicated region
        $region73: #{tpu_custom_call.1} parent=55 // pred_check
          %p383 = pneg %p196
        $region74: #{tpu_custom_call.1} parent=55 // pred_check_branch
          %385 = sbr.rel (%p383) target = $region76
        $region75: #{tpu_custom_call.1} parent=55 // pred_region
          %386 = dma.done [#allocation9], 2048
        $region76: #{tpu_custom_call.1} parent=55 // pred_fallthru
          _
        %s387 = sand.u32 %s36, 1
        %s388 = scalar_lea.sflag [#allocation3], %s387
        %s389 = sand.u32 %s36, 1
        %s390 = smul.addr %s389, 224
        %s391 = scalar_lea.vmem [#allocation2], %s390
        %p392 = pneg %p49
        %p393 = pneg %p46
        %p394 = pneg %p70
        %p395 = pneg %p67
        %p396 = pneg %p91
        %p397 = pneg %p88
        %p398 = pneg %p112
        %p399 = pneg %p109
        %p400 = pneg %p133
        %p401 = pneg %p130
        %p402 = pneg %p154
        %p403 = pneg %p151
        %p404 = pneg %p175
        %p405 = pneg %p172
        %p406 = pneg %p196
        %p407 = pneg %p193
        %p408 = pneg %p217
        %p409 = pneg %p214
        %p410 = pneg %p243
        %p411 = pneg %p240
        %s412 = sand.u32 %s230, 1
        %s413 = scalar_lea.sflag [#allocation4], %s412
        %s414 = sand.u32 %s230, 1
        %s415 = smul.addr %s414, 224
        %s416 = scalar_lea.vmem [#allocation11], %s415
        %s417 = smul.u32 14, %s28
        %s418 = ssub.s32 25, %s417
        %p419 = scmp.lt.s32.totalorder %s418, 14
        %s420 = scalar_select %p419, %s418, 14
        %s421 = smul.u32 128, %s420
        %s422 = smul.u32 %s421, 2
        %s423 = smul.u32 14, %s28
        %s424 = ssub.s32 25, %s423
        %p425 = scmp.lt.s32.totalorder %s424, 14
        %s426 = scalar_select %p425, %s424, 14
        %s427 = smul.u32 128, %s426
        %s428 = smul.u32 %s427, 2
        %v430 = vld [vmem:[%s366] sm:$0xff]
        %v431 = vld [vmem:[%s366 + $0x8] sm:$0xff]
        %v432 = vld [vmem:[%s366 + $0x10] sm:$0xff]
        %v433 = vld [vmem:[%s366 + $0x18] sm:$0xff]
        %v434 = vld [vmem:[%s366 + $0x20] sm:$0xff]
        %v435 = vld [vmem:[%s366 + $0x28] sm:$0xff]
        %v436 = vld [vmem:[%s366 + $0x30] sm:$0xff]
        %v437 = vld [vmem:[%s366 + $0x38] sm:$0xff]
        %v438 = vld [vmem:[%s366 + $0x40] sm:$0xff]
        %v439 = vld [vmem:[%s366 + $0x48] sm:$0xff]
        %v440 = vld [vmem:[%s366 + $0x50] sm:$0xff]
        %v441 = vld [vmem:[%s366 + $0x58] sm:$0xff]
        %v442 = vld [vmem:[%s366 + $0x60] sm:$0xff]
        %v443 = vld [vmem:[%s366 + $0x68] sm:$0xff]
        %v444 = vld [vmem:[%s366 + $0x70] sm:$0xff]
        %v445 = vld [vmem:[%s366 + $0x78] sm:$0xff]
        %v446 = vld [vmem:[%s366 + $0x80] sm:$0xff]
        %v447 = vld [vmem:[%s366 + $0x88] sm:$0xff]
        %v448 = vld [vmem:[%s366 + $0x90] sm:$0xff]
        %v449 = vld [vmem:[%s366 + $0x98] sm:$0xff]
        %v450 = vld [vmem:[%s366 + $0xa0] sm:$0xff]
        %v451 = vld [vmem:[%s366 + $0xa8] sm:$0xff]
        %v452 = vld [vmem:[%s366 + $0xb0] sm:$0xff]
        %v453 = vld [vmem:[%s366 + $0xb8] sm:$0xff]
        %v454 = vld [vmem:[%s366 + $0xc0] sm:$0xff]
        %v455 = vld [vmem:[%s366 + $0xc8] sm:$0xff]
        %v456 = vld [vmem:[%s366 + $0xd0] sm:$0xff]
        %v457 = vld [vmem:[%s366 + $0xd8] sm:$0xff]
        %v458 = vpack.c.bf16 %v432, %v430
        %v459 = vpack.c.bf16 %v433, %v431
        %v460 = vpack.c.bf16 %v436, %v434
        %v461 = vpack.c.bf16 %v437, %v435
        %v462 = vpack.c.bf16 %v440, %v438
        %v463 = vpack.c.bf16 %v441, %v439
        %v464 = vpack.c.bf16 %v444, %v442
        %v465 = vpack.c.bf16 %v445, %v443
        %v466 = vpack.c.bf16 %v448, %v446
        %v467 = vpack.c.bf16 %v449, %v447
        %v468 = vpack.c.bf16 %v452, %v450
        %v469 = vpack.c.bf16 %v453, %v451
        %v470 = vpack.c.bf16 %v456, %v454
        %v471 = vpack.c.bf16 %v457, %v455
        %v472 = vld [vmem:[#allocation5] sm:$0xf]
        %v473 = vld [vmem:[#allocation5 + $0x4] sm:$0xf]
        %v474 = vld [vmem:[#allocation5 + $0x8] sm:$0xf]
        %v475 = vld [vmem:[#allocation5 + $0xc] sm:$0xf]
        %v476 = vld [vmem:[#allocation5 + $0x10] sm:$0xf]
        %v477 = vld [vmem:[#allocation5 + $0x14] sm:$0xf]
        %v478 = vld [vmem:[#allocation5 + $0x18] sm:$0xf]
        %v479 = vld [vmem:[#allocation5 + $0x1c] sm:$0xf]
        %v480 = vld [vmem:[#allocation5 + $0x20] sm:$0xf]
        %v481 = vld [vmem:[#allocation5 + $0x24] sm:$0xf]
        %v482 = vld [vmem:[#allocation5 + $0x28] sm:$0xf]
        %v483 = vld [vmem:[#allocation5 + $0x2c] sm:$0xf]
        %v484 = vld [vmem:[#allocation5 + $0x30] sm:$0xf]
        %v485 = vld [vmem:[#allocation5 + $0x34] sm:$0xf]
        %v486 = vld [vmem:[#allocation5 + $0x38] sm:$0xf]
        %v487 = vld [vmem:[#allocation5 + $0x3c] sm:$0xf]
        %v488 = vld [vmem:[#allocation5 + $0x40] sm:$0xf]
        %v489 = vld [vmem:[#allocation5 + $0x44] sm:$0xf]
        %v490 = vld [vmem:[#allocation5 + $0x48] sm:$0xf]
        %v491 = vld [vmem:[#allocation5 + $0x4c] sm:$0xf]
        %v492 = vld [vmem:[#allocation5 + $0x50] sm:$0xf]
        %v493 = vld [vmem:[#allocation5 + $0x54] sm:$0xf]
        %v494 = vld [vmem:[#allocation5 + $0x58] sm:$0xf]
        %v495 = vld [vmem:[#allocation5 + $0x5c] sm:$0xf]
        %v496 = vld [vmem:[#allocation5 + $0x60] sm:$0xf]
        %v497 = vld [vmem:[#allocation5 + $0x64] sm:$0xf]
        %v498 = vld [vmem:[#allocation5 + $0x68] sm:$0xf]
        %v499 = vld [vmem:[#allocation5 + $0x6c] sm:$0xf]
        %v500 = vld [vmem:[#allocation5 + $0x70] sm:$0xf]
        %v501 = vld [vmem:[#allocation5 + $0x74] sm:$0xf]
        %v502 = vld [vmem:[#allocation5 + $0x78] sm:$0xf]
        %v503 = vld [vmem:[#allocation5 + $0x7c] sm:$0xf]
        %v504 = vld [vmem:[%s2] sm:$0x1]
        %v506 = vlaneseq
        %v507 = vshrl.u32 %v506, 7
        %v508 = vsub.s32 0, %v507
        %v509 = vrot.slane %v504, %v508
        %v543 = vunpack.c.l.b16 %v472
        %v544 = vunpack.c.l.b16 %v473
        %v545 = vunpack.c.l.b16 %v474
        %v546 = vunpack.c.l.b16 %v475
        %v547 = vunpack.c.l.b16 %v476
        %v548 = vunpack.c.l.b16 %v477
        %v549 = vunpack.c.l.b16 %v478
        %v550 = vunpack.c.l.b16 %v479
        %v551 = vunpack.c.l.b16 %v480
        %v552 = vunpack.c.l.b16 %v481
        %v553 = vunpack.c.l.b16 %v482
        %v554 = vunpack.c.l.b16 %v483
        %v555 = vunpack.c.l.b16 %v484
        %v556 = vunpack.c.l.b16 %v485
        %v557 = vunpack.c.l.b16 %v486
        %v558 = vunpack.c.l.b16 %v487
        %v559 = vunpack.c.l.b16 %v488
        %v560 = vunpack.c.l.b16 %v489
        %v561 = vunpack.c.l.b16 %v490
        %v562 = vunpack.c.l.b16 %v491
        %v563 = vunpack.c.l.b16 %v492
        %v564 = vunpack.c.l.b16 %v493
        %v565 = vunpack.c.l.b16 %v494
        %v566 = vunpack.c.l.b16 %v495
        %v567 = vunpack.c.l.b16 %v496
        %v568 = vunpack.c.l.b16 %v497
        %v569 = vunpack.c.l.b16 %v498
        %v570 = vunpack.c.l.b16 %v499
        %v571 = vunpack.c.l.b16 %v500
        %v572 = vunpack.c.l.b16 %v501
        %v573 = vunpack.c.l.b16 %v502
        %v574 = vunpack.c.l.b16 %v503
        %v575 = vpack.c.b16 %v544, %v543
        %v576 = vpack.c.b16 %v546, %v545
        %v577 = vpack.c.b16 %v548, %v547
        %v578 = vpack.c.b16 %v550, %v549
        %v579 = vpack.c.b16 %v552, %v551
        %v580 = vpack.c.b16 %v554, %v553
        %v581 = vpack.c.b16 %v556, %v555
        %v582 = vpack.c.b16 %v558, %v557
        %v583 = vpack.c.b16 %v560, %v559
        %v584 = vpack.c.b16 %v562, %v561
        %v585 = vpack.c.b16 %v564, %v563
        %v586 = vpack.c.b16 %v566, %v565
        %v587 = vpack.c.b16 %v568, %v567
        %v588 = vpack.c.b16 %v570, %v569
        %v589 = vpack.c.b16 %v572, %v571
        %v590 = vpack.c.b16 %v574, %v573
        %607 = vmatprep.subr.bf16.mxu0 0
        %608 = vmatpush1.bf16.msra.mxu0 %v575
        %609 = vmatprep.subr.bf16.mxu0 0
        %610 = vmatpush1.bf16.msra.mxu0 %v576
        %611 = vmatprep.subr.bf16.mxu0 0
        %612 = vmatpush1.bf16.msra.mxu0 %v577
        %613 = vmatprep.subr.bf16.mxu0 0
        %614 = vmatpush1.bf16.msra.mxu0 %v578
        %615 = vmatprep.subr.bf16.mxu0 0
        %616 = vmatpush1.bf16.msra.mxu0 %v579
        %617 = vmatprep.subr.bf16.mxu0 0
        %618 = vmatpush1.bf16.msra.mxu0 %v580
        %619 = vmatprep.subr.bf16.mxu0 0
        %620 = vmatpush1.bf16.msra.mxu0 %v581
        %621 = vmatprep.subr.bf16.mxu0 0
        %622 = vmatpush1.bf16.msra.mxu0 %v582
        %623 = vmatprep.subr.bf16.mxu0 0
        %624 = vmatpush1.bf16.msra.mxu0 %v583
        %625 = vmatprep.subr.bf16.mxu0 0
        %626 = vmatpush1.bf16.msra.mxu0 %v584
        %627 = vmatprep.subr.bf16.mxu0 0
        %628 = vmatpush1.bf16.msra.mxu0 %v585
        %629 = vmatprep.subr.bf16.mxu0 0
        %630 = vmatpush1.bf16.msra.mxu0 %v586
        %631 = vmatprep.subr.bf16.mxu0 0
        %632 = vmatpush1.bf16.msra.mxu0 %v587
        %633 = vmatprep.subr.bf16.mxu0 0
        %634 = vmatpush1.bf16.msra.mxu0 %v588
        %635 = vmatprep.subr.bf16.mxu0 0
        %636 = vmatpush1.bf16.msra.mxu0 %v589
        %637 = vmatprep.subr.bf16.mxu0 0
        %638 = vmatpush1.bf16.msra.mxu0 %v590
        %639 = vmatprep.mubr.bf16.mxu0 %v459
        %640 = vmatmul.mubr.bf16.gmra.mrb[0].mxu0 %v458
        %v641 = vpop.f32.mrb[0].mxu0
        %v642 = vadd.f32 %v509, %v641
        %v643 = vpop.f32.mrb[0].mxu0
        %v644 = vpop.f32.mrb[0].mxu0
        %v645 = vadd.f32 %v509, %v644
        %v646 = vpop.f32.mrb[0].mxu0
        %647 = vmatprep.mubr.bf16.mxu0 %v461
        %648 = vmatmul.mubr.bf16.gmra.mrb[0].mxu0 %v460
        %v649 = vpop.f32.mrb[0].mxu0
        %v650 = vadd.f32 %v509, %v649
        %v651 = vpop.f32.mrb[0].mxu0
        %v652 = vpop.f32.mrb[0].mxu0
        %v653 = vadd.f32 %v509, %v652
        %v654 = vpop.f32.mrb[0].mxu0
        %655 = vmatprep.mubr.bf16.mxu0 %v463
        %656 = vmatmul.mubr.bf16.gmra.mrb[0].mxu0 %v462
        %v657 = vpop.f32.mrb[0].mxu0
        %v658 = vadd.f32 %v509, %v657
        %v659 = vpop.f32.mrb[0].mxu0
        %v660 = vpop.f32.mrb[0].mxu0
        %v661 = vadd.f32 %v509, %v660
        %v662 = vpop.f32.mrb[0].mxu0
        %663 = vmatprep.mubr.bf16.mxu0 %v465
        %664 = vmatmul.mubr.bf16.gmra.mrb[0].mxu0 %v464
        %v665 = vpop.f32.mrb[0].mxu0
        %v666 = vadd.f32 %v509, %v665
        %v667 = vpop.f32.mrb[0].mxu0
        %v668 = vpop.f32.mrb[0].mxu0
        %v669 = vadd.f32 %v509, %v668
        %v670 = vpop.f32.mrb[0].mxu0
        %671 = vmatprep.mubr.bf16.mxu0 %v467
        %672 = vmatmul.mubr.bf16.gmra.mrb[0].mxu0 %v466
        %v673 = vpop.f32.mrb[0].mxu0
        %v674 = vadd.f32 %v509, %v673
        %v675 = vpop.f32.mrb[0].mxu0
        %v676 = vpop.f32.mrb[0].mxu0
        %v677 = vadd.f32 %v509, %v676
        %v678 = vpop.f32.mrb[0].mxu0
        %679 = vmatprep.mubr.bf16.mxu0 %v469
        %680 = vmatmul.mubr.bf16.gmra.mrb[0].mxu0 %v468
        %v681 = vpop.f32.mrb[0].mxu0
        %v682 = vadd.f32 %v509, %v681
        %v683 = vpop.f32.mrb[0].mxu0
        %v684 = vpop.f32.mrb[0].mxu0
        %v685 = vadd.f32 %v509, %v684
        %v686 = vpop.f32.mrb[0].mxu0
        %687 = vmatprep.mubr.bf16.mxu0 %v471
        %688 = vmatmul.mubr.bf16.gmra.mrb[0].mxu0 %v470
        %v689 = vpop.f32.mrb[0].mxu0
        %v690 = vadd.f32 %v509, %v689
        %v691 = vpop.f32.mrb[0].mxu0
        %v692 = vpop.f32.mrb[0].mxu0
        %v693 = vadd.f32 %v509, %v692
        %v694 = vpop.f32.mrb[0].mxu0
        %695 = vdwg.mxu0
        %v696 = vmax.f32 %v642, 0.0
        %v697 = vmax.f32 %v645, 0.0
        %v698 = vmax.f32 %v650, 0.0
        %v699 = vmax.f32 %v653, 0.0
        %v700 = vmax.f32 %v658, 0.0
        %v701 = vmax.f32 %v661, 0.0
        %v702 = vmax.f32 %v666, 0.0
        %v703 = vmax.f32 %v669, 0.0
        %v704 = vmax.f32 %v674, 0.0
        %v705 = vmax.f32 %v677, 0.0
        %v706 = vmax.f32 %v682, 0.0
        %v707 = vmax.f32 %v685, 0.0
        %v708 = vmax.f32 %v690, 0.0
        %v709 = vmax.f32 %v693, 0.0
        %v710 = vpack.c.bf16 %v697, %v696
        %v711 = vpack.c.bf16 %v699, %v698
        %v712 = vpack.c.bf16 %v701, %v700
        %v713 = vpack.c.bf16 %v703, %v702
        %v714 = vpack.c.bf16 %v705, %v704
        %v715 = vpack.c.bf16 %v707, %v706
        %v716 = vpack.c.bf16 %v709, %v708
        %v717 = vld [vmem:[#allocation7] sm:$0xf]
        %v718 = vld [vmem:[#allocation7 + $0x4] sm:$0xf]
        %v719 = vld [vmem:[#allocation7 + $0x8] sm:$0xf]
        %v720 = vld [vmem:[#allocation7 + $0xc] sm:$0xf]
        %v721 = vld [vmem:[#allocation7 + $0x10] sm:$0xf]
        %v722 = vld [vmem:[#allocation7 + $0x14] sm:$0xf]
        %v723 = vld [vmem:[#allocation7 + $0x18] sm:$0xf]
        %v724 = vld [vmem:[#allocation7 + $0x1c] sm:$0xf]
        %v725 = vld [vmem:[#allocation7 + $0x20] sm:$0xf]
        %v726 = vld [vmem:[#allocation7 + $0x24] sm:$0xf]
        %v727 = vld [vmem:[#allocation7 + $0x28] sm:$0xf]
        %v728 = vld [vmem:[#allocation7 + $0x2c] sm:$0xf]
        %v729 = vld [vmem:[#allocation7 + $0x30] sm:$0xf]
        %v730 = vld [vmem:[#allocation7 + $0x34] sm:$0xf]
        %v731 = vld [vmem:[#allocation7 + $0x38] sm:$0xf]
        %v732 = vld [vmem:[#allocation7 + $0x3c] sm:$0xf]
        %v733 = vld [vmem:[%s4] sm:$0x1]
        %v735 = vlaneseq
        %v736 = vshrl.u32 %v735, 7
        %v737 = vsub.s32 0, %v736
        %v738 = vrot.slane %v733, %v737
        %v756 = vunpack.c.l.b16 %v717
        %v757 = vunpack.c.l.b16 %v718
        %v758 = vunpack.c.l.b16 %v719
        %v759 = vunpack.c.l.b16 %v720
        %v760 = vunpack.c.l.b16 %v721
        %v761 = vunpack.c.l.b16 %v722
        %v762 = vunpack.c.l.b16 %v723
        %v763 = vunpack.c.l.b16 %v724
        %v764 = vunpack.c.l.b16 %v725
        %v765 = vunpack.c.l.b16 %v726
        %v766 = vunpack.c.l.b16 %v727
        %v767 = vunpack.c.l.b16 %v728
        %v768 = vunpack.c.l.b16 %v729
        %v769 = vunpack.c.l.b16 %v730
        %v770 = vunpack.c.l.b16 %v731
        %v771 = vunpack.c.l.b16 %v732
        %v772 = vpack.c.b16 %v757, %v756
        %v773 = vpack.c.b16 %v759, %v758
        %v774 = vpack.c.b16 %v761, %v760
        %v775 = vpack.c.b16 %v763, %v762
        %v776 = vpack.c.b16 %v765, %v764
        %v777 = vpack.c.b16 %v767, %v766
        %v778 = vpack.c.b16 %v769, %v768
        %v779 = vpack.c.b16 %v771, %v770
        %788 = vmatprep.subr.bf16.mxu0 0
        %789 = vmatpush1.bf16.msra.mxu0 %v772
        %790 = vmatprep.subr.bf16.mxu0 0
        %791 = vmatpush1.bf16.msra.mxu0 %v773
        %792 = vmatprep.subr.bf16.mxu0 0
        %793 = vmatpush1.bf16.msra.mxu0 %v774
        %794 = vmatprep.subr.bf16.mxu0 0
        %795 = vmatpush1.bf16.msra.mxu0 %v775
        %796 = vmatprep.subr.bf16.mxu0 0
        %797 = vmatpush1.bf16.msra.mxu0 %v776
        %798 = vmatprep.subr.bf16.mxu0 0
        %799 = vmatpush1.bf16.msra.mxu0 %v777
        %800 = vmatprep.subr.bf16.mxu0 0
        %801 = vmatpush1.bf16.msra.mxu0 %v778
        %802 = vmatprep.subr.bf16.mxu0 0
        %803 = vmatpush1.bf16.msra.mxu0 %v779
        %804 = vmatprep.subr.bf16.mxu0 0
        %805 = vmatpush1.bf16.msra.mxu0 0
        %806 = vmatprep.subr.bf16.mxu0 0
        %807 = vmatpush1.bf16.msra.mxu0 0
        %808 = vmatprep.subr.bf16.mxu0 0
        %809 = vmatpush1.bf16.msra.mxu0 0
        %810 = vmatprep.subr.bf16.mxu0 0
        %811 = vmatpush1.bf16.msra.mxu0 0
        %812 = vmatprep.subr.bf16.mxu0 0
        %813 = vmatpush1.bf16.msra.mxu0 0
        %814 = vmatprep.subr.bf16.mxu0 0
        %815 = vmatpush1.bf16.msra.mxu0 0
        %816 = vmatprep.subr.bf16.mxu0 0
        %817 = vmatpush1.bf16.msra.mxu0 0
        %818 = vmatprep.subr.bf16.mxu0 0
        %819 = vmatpush1.bf16.msra.mxu0 0
        %820 = vmatprep.mubr.bf16.mxu0 0
        %821 = vmatmul.mubr.bf16.gmra.mrb[0].mxu0 %v710
        %v822 = vpop.f32.mrb[0].mxu0
        %v823 = vadd.f32 %v738, %v822
        %v824 = vpop.f32.mrb[0].mxu0
        %v825 = vpop.f32.mrb[0].mxu0
        %v826 = vadd.f32 %v738, %v825
        %v827 = vpop.f32.mrb[0].mxu0
        %828 = vmatprep.mubr.bf16.mxu0 0
        %829 = vmatmul.mubr.bf16.gmra.mrb[0].mxu0 %v711
        %v830 = vpop.f32.mrb[0].mxu0
        %v831 = vadd.f32 %v738, %v830
        %v832 = vpop.f32.mrb[0].mxu0
        %v833 = vpop.f32.mrb[0].mxu0
        %v834 = vadd.f32 %v738, %v833
        %v835 = vpop.f32.mrb[0].mxu0
        %836 = vmatprep.mubr.bf16.mxu0 0
        %837 = vmatmul.mubr.bf16.gmra.mrb[0].mxu0 %v712
        %v838 = vpop.f32.mrb[0].mxu0
        %v839 = vadd.f32 %v738, %v838
        %v840 = vpop.f32.mrb[0].mxu0
        %v841 = vpop.f32.mrb[0].mxu0
        %v842 = vadd.f32 %v738, %v841
        %v843 = vpop.f32.mrb[0].mxu0
        %844 = vmatprep.mubr.bf16.mxu0 0
        %845 = vmatmul.mubr.bf16.gmra.mrb[0].mxu0 %v713
        %v846 = vpop.f32.mrb[0].mxu0
        %v847 = vadd.f32 %v738, %v846
        %v848 = vpop.f32.mrb[0].mxu0
        %v849 = vpop.f32.mrb[0].mxu0
        %v850 = vadd.f32 %v738, %v849
        %v851 = vpop.f32.mrb[0].mxu0
        %852 = vmatprep.mubr.bf16.mxu0 0
        %853 = vmatmul.mubr.bf16.gmra.mrb[0].mxu0 %v714
        %v854 = vpop.f32.mrb[0].mxu0
        %v855 = vadd.f32 %v738, %v854
        %v856 = vpop.f32.mrb[0].mxu0
        %v857 = vpop.f32.mrb[0].mxu0
        %v858 = vadd.f32 %v738, %v857
        %v859 = vpop.f32.mrb[0].mxu0
        %860 = vmatprep.mubr.bf16.mxu0 0
        %861 = vmatmul.mubr.bf16.gmra.mrb[0].mxu0 %v715
        %v862 = vpop.f32.mrb[0].mxu0
        %v863 = vadd.f32 %v738, %v862
        %v864 = vpop.f32.mrb[0].mxu0
        %v865 = vpop.f32.mrb[0].mxu0
        %v866 = vadd.f32 %v738, %v865
        %v867 = vpop.f32.mrb[0].mxu0
        %868 = vmatprep.mubr.bf16.mxu0 0
        %869 = vmatmul.mubr.bf16.gmra.mrb[0].mxu0 %v716
        %v870 = vpop.f32.mrb[0].mxu0
        %v871 = vadd.f32 %v738, %v870
        %v872 = vpop.f32.mrb[0].mxu0
        %v873 = vpop.f32.mrb[0].mxu0
        %v874 = vadd.f32 %v738, %v873
        %v875 = vpop.f32.mrb[0].mxu0
        %876 = vdwg.mxu0
        %v877 = vmax.f32 %v823, 0.0
        %v878 = vmax.f32 %v826, 0.0
        %v879 = vmax.f32 %v831, 0.0
        %v880 = vmax.f32 %v834, 0.0
        %v881 = vmax.f32 %v839, 0.0
        %v882 = vmax.f32 %v842, 0.0
        %v883 = vmax.f32 %v847, 0.0
        %v884 = vmax.f32 %v850, 0.0
        %v885 = vmax.f32 %v855, 0.0
        %v886 = vmax.f32 %v858, 0.0
        %v887 = vmax.f32 %v863, 0.0
        %v888 = vmax.f32 %v866, 0.0
        %v889 = vmax.f32 %v871, 0.0
        %v890 = vmax.f32 %v874, 0.0
        %v891 = vpack.c.bf16 %v878, %v877
        %v892 = vpack.c.bf16 %v880, %v879
        %v893 = vpack.c.bf16 %v882, %v881
        %v894 = vpack.c.bf16 %v884, %v883
        %v895 = vpack.c.bf16 %v886, %v885
        %v896 = vpack.c.bf16 %v888, %v887
        %v897 = vpack.c.bf16 %v890, %v889
        %v898 = vld [vmem:[#allocation8] sm:$0xf]
        %v899 = vld [vmem:[#allocation8 + $0x4] sm:$0xf]
        %v900 = vld [vmem:[#allocation8 + $0x8] sm:$0xf]
        %v901 = vld [vmem:[#allocation8 + $0xc] sm:$0xf]
        %v902 = vld [vmem:[#allocation8 + $0x10] sm:$0xf]
        %v903 = vld [vmem:[#allocation8 + $0x14] sm:$0xf]
        %v904 = vld [vmem:[#allocation8 + $0x18] sm:$0xf]
        %v905 = vld [vmem:[#allocation8 + $0x1c] sm:$0xf]
        %v906 = vld [vmem:[#allocation8 + $0x20] sm:$0xf]
        %v907 = vld [vmem:[#allocation8 + $0x24] sm:$0xf]
        %v908 = vld [vmem:[#allocation8 + $0x28] sm:$0xf]
        %v909 = vld [vmem:[#allocation8 + $0x2c] sm:$0xf]
        %v910 = vld [vmem:[#allocation8 + $0x30] sm:$0xf]
        %v911 = vld [vmem:[#allocation8 + $0x34] sm:$0xf]
        %v912 = vld [vmem:[#allocation8 + $0x38] sm:$0xf]
        %v913 = vld [vmem:[#allocation8 + $0x3c] sm:$0xf]
        %v914 = vld [vmem:[%s6] sm:$0x1]
        %v916 = vlaneseq
        %v917 = vshrl.u32 %v916, 7
        %v918 = vsub.s32 0, %v917
        %v919 = vrot.slane %v914, %v918
        %v937 = vunpack.c.l.b16 %v898
        %v938 = vunpack.c.l.b16 %v899
        %v939 = vunpack.c.l.b16 %v900
        %v940 = vunpack.c.l.b16 %v901
        %v941 = vunpack.c.l.b16 %v902
        %v942 = vunpack.c.l.b16 %v903
        %v943 = vunpack.c.l.b16 %v904
        %v944 = vunpack.c.l.b16 %v905
        %v945 = vunpack.c.l.b16 %v906
        %v946 = vunpack.c.l.b16 %v907
        %v947 = vunpack.c.l.b16 %v908
        %v948 = vunpack.c.l.b16 %v909
        %v949 = vunpack.c.l.b16 %v910
        %v950 = vunpack.c.l.b16 %v911
        %v951 = vunpack.c.l.b16 %v912
        %v952 = vunpack.c.l.b16 %v913
        %v953 = vpack.c.b16 %v938, %v937
        %v954 = vpack.c.b16 %v940, %v939
        %v955 = vpack.c.b16 %v942, %v941
        %v956 = vpack.c.b16 %v944, %v943
        %v957 = vpack.c.b16 %v946, %v945
        %v958 = vpack.c.b16 %v948, %v947
        %v959 = vpack.c.b16 %v950, %v949
        %v960 = vpack.c.b16 %v952, %v951
        %969 = vmatprep.subr.bf16.mxu0 0
        %970 = vmatpush1.bf16.msra.mxu0 %v953
        %971 = vmatprep.subr.bf16.mxu0 0
        %972 = vmatpush1.bf16.msra.mxu0 %v954
        %973 = vmatprep.subr.bf16.mxu0 0
        %974 = vmatpush1.bf16.msra.mxu0 %v955
        %975 = vmatprep.subr.bf16.mxu0 0
        %976 = vmatpush1.bf16.msra.mxu0 %v956
        %977 = vmatprep.subr.bf16.mxu0 0
        %978 = vmatpush1.bf16.msra.mxu0 %v957
        %979 = vmatprep.subr.bf16.mxu0 0
        %980 = vmatpush1.bf16.msra.mxu0 %v958
        %981 = vmatprep.subr.bf16.mxu0 0
        %982 = vmatpush1.bf16.msra.mxu0 %v959
        %983 = vmatprep.subr.bf16.mxu0 0
        %984 = vmatpush1.bf16.msra.mxu0 %v960
        %985 = vmatprep.subr.bf16.mxu0 0
        %986 = vmatpush1.bf16.msra.mxu0 0
        %987 = vmatprep.subr.bf16.mxu0 0
        %988 = vmatpush1.bf16.msra.mxu0 0
        %989 = vmatprep.subr.bf16.mxu0 0
        %990 = vmatpush1.bf16.msra.mxu0 0
        %991 = vmatprep.subr.bf16.mxu0 0
        %992 = vmatpush1.bf16.msra.mxu0 0
        %993 = vmatprep.subr.bf16.mxu0 0
        %994 = vmatpush1.bf16.msra.mxu0 0
        %995 = vmatprep.subr.bf16.mxu0 0
        %996 = vmatpush1.bf16.msra.mxu0 0
        %997 = vmatprep.subr.bf16.mxu0 0
        %998 = vmatpush1.bf16.msra.mxu0 0
        %999 = vmatprep.subr.bf16.mxu0 0
        %1000 = vmatpush1.bf16.msra.mxu0 0
        %1001 = vmatprep.mubr.bf16.mxu0 0
        %1002 = vmatmul.mubr.bf16.gmra.mrb[0].mxu0 %v891
        %v1003 = vpop.f32.mrb[0].mxu0
        %v1004 = vadd.f32 %v919, %v1003
        %v1005 = vpop.f32.mrb[0].mxu0
        %v1006 = vpop.f32.mrb[0].mxu0
        %v1007 = vadd.f32 %v919, %v1006
        %v1008 = vpop.f32.mrb[0].mxu0
        %1009 = vmatprep.mubr.bf16.mxu0 0
        %1010 = vmatmul.mubr.bf16.gmra.mrb[0].mxu0 %v892
        %v1011 = vpop.f32.mrb[0].mxu0
        %v1012 = vadd.f32 %v919, %v1011
        %v1013 = vpop.f32.mrb[0].mxu0
        %v1014 = vpop.f32.mrb[0].mxu0
        %v1015 = vadd.f32 %v919, %v1014
        %v1016 = vpop.f32.mrb[0].mxu0
        %1017 = vmatprep.mubr.bf16.mxu0 0
        %1018 = vmatmul.mubr.bf16.gmra.mrb[0].mxu0 %v893
        %v1019 = vpop.f32.mrb[0].mxu0
        %v1020 = vadd.f32 %v919, %v1019
        %v1021 = vpop.f32.mrb[0].mxu0
        %v1022 = vpop.f32.mrb[0].mxu0
        %v1023 = vadd.f32 %v919, %v1022
        %v1024 = vpop.f32.mrb[0].mxu0
        %1025 = vmatprep.mubr.bf16.mxu0 0
        %1026 = vmatmul.mubr.bf16.gmra.mrb[0].mxu0 %v894
        %v1027 = vpop.f32.mrb[0].mxu0
        %v1028 = vadd.f32 %v919, %v1027
        %v1029 = vpop.f32.mrb[0].mxu0
        %v1030 = vpop.f32.mrb[0].mxu0
        %v1031 = vadd.f32 %v919, %v1030
        %v1032 = vpop.f32.mrb[0].mxu0
        %1033 = vmatprep.mubr.bf16.mxu0 0
        %1034 = vmatmul.mubr.bf16.gmra.mrb[0].mxu0 %v895
        %v1035 = vpop.f32.mrb[0].mxu0
        %v1036 = vadd.f32 %v919, %v1035
        %v1037 = vpop.f32.mrb[0].mxu0
        %v1038 = vpop.f32.mrb[0].mxu0
        %v1039 = vadd.f32 %v919, %v1038
        %v1040 = vpop.f32.mrb[0].mxu0
        %1041 = vmatprep.mubr.bf16.mxu0 0
        %1042 = vmatmul.mubr.bf16.gmra.mrb[0].mxu0 %v896
        %v1043 = vpop.f32.mrb[0].mxu0
        %v1044 = vadd.f32 %v919, %v1043
        %v1045 = vpop.f32.mrb[0].mxu0
        %v1046 = vpop.f32.mrb[0].mxu0
        %v1047 = vadd.f32 %v919, %v1046
        %v1048 = vpop.f32.mrb[0].mxu0
        %1049 = vmatprep.mubr.bf16.mxu0 0
        %1050 = vmatmul.mubr.bf16.gmra.mrb[0].mxu0 %v897
        %v1051 = vpop.f32.mrb[0].mxu0
        %v1052 = vadd.f32 %v919, %v1051
        %v1053 = vpop.f32.mrb[0].mxu0
        %v1054 = vpop.f32.mrb[0].mxu0
        %v1055 = vadd.f32 %v919, %v1054
        %v1056 = vpop.f32.mrb[0].mxu0
        %1057 = vdwg.mxu0
        %v1058 = vmax.f32 %v1004, 0.0
        %v1059 = vmax.f32 %v1007, 0.0
        %v1060 = vmax.f32 %v1012, 0.0
        %v1061 = vmax.f32 %v1015, 0.0
        %v1062 = vmax.f32 %v1020, 0.0
        %v1063 = vmax.f32 %v1023, 0.0
        %v1064 = vmax.f32 %v1028, 0.0
        %v1065 = vmax.f32 %v1031, 0.0
        %v1066 = vmax.f32 %v1036, 0.0
        %v1067 = vmax.f32 %v1039, 0.0
        %v1068 = vmax.f32 %v1044, 0.0
        %v1069 = vmax.f32 %v1047, 0.0
        %v1070 = vmax.f32 %v1052, 0.0
        %v1071 = vmax.f32 %v1055, 0.0
        %v1072 = vpack.c.bf16 %v1059, %v1058
        %v1073 = vpack.c.bf16 %v1061, %v1060
        %v1074 = vpack.c.bf16 %v1063, %v1062
        %v1075 = vpack.c.bf16 %v1065, %v1064
        %v1076 = vpack.c.bf16 %v1067, %v1066
        %v1077 = vpack.c.bf16 %v1069, %v1068
        %v1078 = vpack.c.bf16 %v1071, %v1070
        %v1079 = vld [vmem:[#allocation10] sm:$0xff]
        %v1080 = vld [vmem:[#allocation10 + $0x8] sm:$0xff]
        %v1081 = vld [vmem:[#allocation10 + $0x10] sm:$0xff]
        %v1082 = vld [vmem:[#allocation10 + $0x18] sm:$0xff]
        %v1083 = vld [vmem:[#allocation10 + $0x20] sm:$0xff]
        %v1084 = vld [vmem:[#allocation10 + $0x28] sm:$0xff]
        %v1085 = vld [vmem:[#allocation10 + $0x30] sm:$0xff]
        %v1086 = vld [vmem:[#allocation10 + $0x38] sm:$0xff]
        %v1087 = vld [vmem:[#allocation10 + $0x40] sm:$0xff]
        %v1088 = vld [vmem:[#allocation10 + $0x48] sm:$0xff]
        %v1089 = vld [vmem:[#allocation10 + $0x50] sm:$0xff]
        %v1090 = vld [vmem:[#allocation10 + $0x58] sm:$0xff]
        %v1091 = vld [vmem:[#allocation10 + $0x60] sm:$0xff]
        %v1092 = vld [vmem:[#allocation10 + $0x68] sm:$0xff]
        %v1093 = vld [vmem:[#allocation10 + $0x70] sm:$0xff]
        %v1094 = vld [vmem:[#allocation10 + $0x78] sm:$0xff]
        %v1095 = vld [vmem:[%s8] sm:$0x3]
        %v1097 = vlaneseq
        %v1098 = vshrl.u32 %v1097, 7
        %v1099 = vsub.s32 0, %v1098
        %v1100 = vrot.slane %v1095, %v1099
        %v1101 = vlaneseq
        %v1102 = vshrl.u32 %v1101, 7
        %v1103 = vsub.s32 1, %v1102
        %v1104 = vrot.slane %v1095, %v1103
        %v1123 = vunpack.c.l.b16 %v1079
        %v1124 = vunpack.c.h.b16 %v1079
        %v1125 = vunpack.c.l.b16 %v1080
        %v1126 = vunpack.c.h.b16 %v1080
        %v1127 = vunpack.c.l.b16 %v1081
        %v1128 = vunpack.c.h.b16 %v1081
        %v1129 = vunpack.c.l.b16 %v1082
        %v1130 = vunpack.c.h.b16 %v1082
        %v1131 = vunpack.c.l.b16 %v1083
        %v1132 = vunpack.c.h.b16 %v1083
        %v1133 = vunpack.c.l.b16 %v1084
        %v1134 = vunpack.c.h.b16 %v1084
        %v1135 = vunpack.c.l.b16 %v1085
        %v1136 = vunpack.c.h.b16 %v1085
        %v1137 = vunpack.c.l.b16 %v1086
        %v1138 = vunpack.c.h.b16 %v1086
        %v1139 = vunpack.c.l.b16 %v1087
        %v1140 = vunpack.c.h.b16 %v1087
        %v1141 = vunpack.c.l.b16 %v1088
        %v1142 = vunpack.c.h.b16 %v1088
        %v1143 = vunpack.c.l.b16 %v1089
        %v1144 = vunpack.c.h.b16 %v1089
        %v1145 = vunpack.c.l.b16 %v1090
        %v1146 = vunpack.c.h.b16 %v1090
        %v1147 = vunpack.c.l.b16 %v1091
        %v1148 = vunpack.c.h.b16 %v1091
        %v1149 = vunpack.c.l.b16 %v1092
        %v1150 = vunpack.c.h.b16 %v1092
        %v1151 = vunpack.c.l.b16 %v1093
        %v1152 = vunpack.c.h.b16 %v1093
        %v1153 = vunpack.c.l.b16 %v1094
        %v1154 = vunpack.c.h.b16 %v1094
        %v1155 = vpack.c.b16 %v1125, %v1123
        %v1156 = vpack.c.b16 %v1126, %v1124
        %v1157 = vpack.c.b16 %v1129, %v1127
        %v1158 = vpack.c.b16 %v1130, %v1128
        %v1159 = vpack.c.b16 %v1133, %v1131
        %v1160 = vpack.c.b16 %v1134, %v1132
        %v1161 = vpack.c.b16 %v1137, %v1135
        %v1162 = vpack.c.b16 %v1138, %v1136
        %v1163 = vpack.c.b16 %v1141, %v1139
        %v1164 = vpack.c.b16 %v1142, %v1140
        %v1165 = vpack.c.b16 %v1145, %v1143
        %v1166 = vpack.c.b16 %v1146, %v1144
        %v1167 = vpack.c.b16 %v1149, %v1147
        %v1168 = vpack.c.b16 %v1150, %v1148
        %v1169 = vpack.c.b16 %v1153, %v1151
        %v1170 = vpack.c.b16 %v1154, %v1152
        %1187 = vmatprep.subr.bf16.mxu0 %v1156
        %1188 = vmatpush1.bf16.msra.mxu0 %v1155
        %1189 = vmatprep.subr.bf16.mxu0 %v1158
        %1190 = vmatpush1.bf16.msra.mxu0 %v1157
        %1191 = vmatprep.subr.bf16.mxu0 %v1160
        %1192 = vmatpush1.bf16.msra.mxu0 %v1159
        %1193 = vmatprep.subr.bf16.mxu0 %v1162
        %1194 = vmatpush1.bf16.msra.mxu0 %v1161
        %1195 = vmatprep.subr.bf16.mxu0 %v1164
        %1196 = vmatpush1.bf16.msra.mxu0 %v1163
        %1197 = vmatprep.subr.bf16.mxu0 %v1166
        %1198 = vmatpush1.bf16.msra.mxu0 %v1165
        %1199 = vmatprep.subr.bf16.mxu0 %v1168
        %1200 = vmatpush1.bf16.msra.mxu0 %v1167
        %1201 = vmatprep.subr.bf16.mxu0 %v1170
        %1202 = vmatpush1.bf16.msra.mxu0 %v1169
        %1203 = vmatprep.subr.bf16.mxu0 0
        %1204 = vmatpush1.bf16.msra.mxu0 0
        %1205 = vmatprep.subr.bf16.mxu0 0
        %1206 = vmatpush1.bf16.msra.mxu0 0
        %1207 = vmatprep.subr.bf16.mxu0 0
        %1208 = vmatpush1.bf16.msra.mxu0 0
        %1209 = vmatprep.subr.bf16.mxu0 0
        %1210 = vmatpush1.bf16.msra.mxu0 0
        %1211 = vmatprep.subr.bf16.mxu0 0
        %1212 = vmatpush1.bf16.msra.mxu0 0
        %1213 = vmatprep.subr.bf16.mxu0 0
        %1214 = vmatpush1.bf16.msra.mxu0 0
        %1215 = vmatprep.subr.bf16.mxu0 0
        %1216 = vmatpush1.bf16.msra.mxu0 0
        %1217 = vmatprep.subr.bf16.mxu0 0
        %1218 = vmatpush1.bf16.msra.mxu0 0
        %1219 = vmatprep.mubr.bf16.mxu0 0
        %1220 = vmatmul.mubr.bf16.gmra.mrb[0].mxu0 %v1072
        %v1221 = vpop.f32.mrb[0].mxu0
        %v1222 = vadd.f32 %v1100, %v1221
        %v1223 = vpop.f32.mrb[0].mxu0
        %v1224 = vadd.f32 %v1104, %v1223
        %v1225 = vpop.f32.mrb[0].mxu0
        %v1226 = vadd.f32 %v1100, %v1225
        %v1227 = vpop.f32.mrb[0].mxu0
        %v1228 = vadd.f32 %v1104, %v1227
        %1229 = vmatprep.mubr.bf16.mxu0 0
        %1230 = vmatmul.mubr.bf16.gmra.mrb[0].mxu0 %v1073
        %v1231 = vpop.f32.mrb[0].mxu0
        %v1232 = vadd.f32 %v1100, %v1231
        %v1233 = vpop.f32.mrb[0].mxu0
        %v1234 = vadd.f32 %v1104, %v1233
        %v1235 = vpop.f32.mrb[0].mxu0
        %v1236 = vadd.f32 %v1100, %v1235
        %v1237 = vpop.f32.mrb[0].mxu0
        %v1238 = vadd.f32 %v1104, %v1237
        %1239 = vmatprep.mubr.bf16.mxu0 0
        %1240 = vmatmul.mubr.bf16.gmra.mrb[0].mxu0 %v1074
        %v1241 = vpop.f32.mrb[0].mxu0
        %v1242 = vadd.f32 %v1100, %v1241
        %v1243 = vpop.f32.mrb[0].mxu0
        %v1244 = vadd.f32 %v1104, %v1243
        %v1245 = vpop.f32.mrb[0].mxu0
        %v1246 = vadd.f32 %v1100, %v1245
        %v1247 = vpop.f32.mrb[0].mxu0
        %v1248 = vadd.f32 %v1104, %v1247
        %1249 = vmatprep.mubr.bf16.mxu0 0
        %1250 = vmatmul.mubr.bf16.gmra.mrb[0].mxu0 %v1075
        %v1251 = vpop.f32.mrb[0].mxu0
        %v1252 = vadd.f32 %v1100, %v1251
        %v1253 = vpop.f32.mrb[0].mxu0
        %v1254 = vadd.f32 %v1104, %v1253
        %v1255 = vpop.f32.mrb[0].mxu0
        %v1256 = vadd.f32 %v1100, %v1255
        %v1257 = vpop.f32.mrb[0].mxu0
        %v1258 = vadd.f32 %v1104, %v1257
        %1259 = vmatprep.mubr.bf16.mxu0 0
        %1260 = vmatmul.mubr.bf16.gmra.mrb[0].mxu0 %v1076
        %v1261 = vpop.f32.mrb[0].mxu0
        %v1262 = vadd.f32 %v1100, %v1261
        %v1263 = vpop.f32.mrb[0].mxu0
        %v1264 = vadd.f32 %v1104, %v1263
        %v1265 = vpop.f32.mrb[0].mxu0
        %v1266 = vadd.f32 %v1100, %v1265
        %v1267 = vpop.f32.mrb[0].mxu0
        %v1268 = vadd.f32 %v1104, %v1267
        %1269 = vmatprep.mubr.bf16.mxu0 0
        %1270 = vmatmul.mubr.bf16.gmra.mrb[0].mxu0 %v1077
        %v1271 = vpop.f32.mrb[0].mxu0
        %v1272 = vadd.f32 %v1100, %v1271
        %v1273 = vpop.f32.mrb[0].mxu0
        %v1274 = vadd.f32 %v1104, %v1273
        %v1275 = vpop.f32.mrb[0].mxu0
        %v1276 = vadd.f32 %v1100, %v1275
        %v1277 = vpop.f32.mrb[0].mxu0
        %v1278 = vadd.f32 %v1104, %v1277
        %1279 = vmatprep.mubr.bf16.mxu0 0
        %1280 = vmatmul.mubr.bf16.gmra.mrb[0].mxu0 %v1078
        %v1281 = vpop.f32.mrb[0].mxu0
        %v1282 = vadd.f32 %v1100, %v1281
        %v1283 = vpop.f32.mrb[0].mxu0
        %v1284 = vadd.f32 %v1104, %v1283
        %v1285 = vpop.f32.mrb[0].mxu0
        %v1286 = vadd.f32 %v1100, %v1285
        %v1287 = vpop.f32.mrb[0].mxu0
        %v1288 = vadd.f32 %v1104, %v1287
        %1289 = vdwg.mxu0
        %v1290 = vmax.f32 %v1222, 0.0
        %v1291 = vmax.f32 %v1224, 0.0
        %v1292 = vmax.f32 %v1226, 0.0
        %v1293 = vmax.f32 %v1228, 0.0
        %v1294 = vmax.f32 %v1232, 0.0
        %v1295 = vmax.f32 %v1234, 0.0
        %v1296 = vmax.f32 %v1236, 0.0
        %v1297 = vmax.f32 %v1238, 0.0
        %v1298 = vmax.f32 %v1242, 0.0
        %v1299 = vmax.f32 %v1244, 0.0
        %v1300 = vmax.f32 %v1246, 0.0
        %v1301 = vmax.f32 %v1248, 0.0
        %v1302 = vmax.f32 %v1252, 0.0
        %v1303 = vmax.f32 %v1254, 0.0
        %v1304 = vmax.f32 %v1256, 0.0
        %v1305 = vmax.f32 %v1258, 0.0
        %v1306 = vmax.f32 %v1262, 0.0
        %v1307 = vmax.f32 %v1264, 0.0
        %v1308 = vmax.f32 %v1266, 0.0
        %v1309 = vmax.f32 %v1268, 0.0
        %v1310 = vmax.f32 %v1272, 0.0
        %v1311 = vmax.f32 %v1274, 0.0
        %v1312 = vmax.f32 %v1276, 0.0
        %v1313 = vmax.f32 %v1278, 0.0
        %v1314 = vmax.f32 %v1282, 0.0
        %v1315 = vmax.f32 %v1284, 0.0
        %v1316 = vmax.f32 %v1286, 0.0
        %v1317 = vmax.f32 %v1288, 0.0
        %1318 = vst [vmem:[%s416] sm:$0xff] %v1290
        %1319 = vst [vmem:[%s416 + $0x8] sm:$0xff] %v1291
        %1320 = vst [vmem:[%s416 + $0x10] sm:$0xff] %v1292
        %1321 = vst [vmem:[%s416 + $0x18] sm:$0xff] %v1293
        %1322 = vst [vmem:[%s416 + $0x20] sm:$0xff] %v1294
        %1323 = vst [vmem:[%s416 + $0x28] sm:$0xff] %v1295
        %1324 = vst [vmem:[%s416 + $0x30] sm:$0xff] %v1296
        %1325 = vst [vmem:[%s416 + $0x38] sm:$0xff] %v1297
        %1326 = vst [vmem:[%s416 + $0x40] sm:$0xff] %v1298
        %1327 = vst [vmem:[%s416 + $0x48] sm:$0xff] %v1299
        %1328 = vst [vmem:[%s416 + $0x50] sm:$0xff] %v1300
        %1329 = vst [vmem:[%s416 + $0x58] sm:$0xff] %v1301
        %1330 = vst [vmem:[%s416 + $0x60] sm:$0xff] %v1302
        %1331 = vst [vmem:[%s416 + $0x68] sm:$0xff] %v1303
        %1332 = vst [vmem:[%s416 + $0x70] sm:$0xff] %v1304
        %1333 = vst [vmem:[%s416 + $0x78] sm:$0xff] %v1305
        %1334 = vst [vmem:[%s416 + $0x80] sm:$0xff] %v1306
        %1335 = vst [vmem:[%s416 + $0x88] sm:$0xff] %v1307
        %1336 = vst [vmem:[%s416 + $0x90] sm:$0xff] %v1308
        %1337 = vst [vmem:[%s416 + $0x98] sm:$0xff] %v1309
        %1338 = vst [vmem:[%s416 + $0xa0] sm:$0xff] %v1310
        %1339 = vst [vmem:[%s416 + $0xa8] sm:$0xff] %v1311
        %1340 = vst [vmem:[%s416 + $0xb0] sm:$0xff] %v1312
        %1341 = vst [vmem:[%s416 + $0xb8] sm:$0xff] %v1313
        %1342 = vst [vmem:[%s416 + $0xc0] sm:$0xff] %v1314
        %1343 = vst [vmem:[%s416 + $0xc8] sm:$0xff] %v1315
        %1344 = vst [vmem:[%s416 + $0xd0] sm:$0xff] %v1316
        %1345 = vst [vmem:[%s416 + $0xd8] sm:$0xff] %v1317
        %s1346 = sand.u32 %s230, 1
        %s1347 = scalar_lea.sflag [#allocation4], %s1346
        %s1348 = sand.u32 %s230, 1
        %s1349 = smul.addr %s1348, 224
        %s1350 = scalar_lea.vmem [#allocation11], %s1349
        // Predicated region
        $region77: #{tpu_custom_call.1} parent=55 // pred_check
          %p1351 = pneg %p240
        $region78: #{tpu_custom_call.1} parent=55 // pred_check_branch
          %1353 = sbr.rel (%p1351) target = $region80
        $region79: #{tpu_custom_call.1} parent=55 // pred_region
          %s1354 = smul.u32 14, %s28
          %s1355 = ssub.s32 25, %s1354
          %p1356 = scmp.lt.s32.totalorder %s1355, 14
          %s1357 = scalar_select %p1356, %s1355, 14
          %s1358 = smul.u32 128, %s1357
          %s1359 = smul.u32 %s1358, 2
          %s1361 = ssub.s32 3584, %s1359
          %1362 = vsyncadd %s1347, %s1361
          %p1363 = scmp.ne.s32.totalorder 0, %s1359
          %s1364 = smul.addr %s1354, 2
          %s1365 = smul.addr %s1364, 128
          %s1366 = scalar_lea.hbm %s9, %s1365
          %s1367 = smul.u32 16, %s1357
          %s1368 = sshll.u32 %s1350, 4
          %s1369 = int_to_ptr.vmem [resolvable:$true] %s1368
          %s1370 = sshll.u32 %s1367, 4
          %1374 = dma.vmem_to_hbm [thread:$0]  (%p1363), %s1369, %s1370, %s1366, %s1347, 256, 256, 16
        $region80: #{tpu_custom_call.1} parent=55 // pred_fallthru
          _
      $region56: #{tpu_custom_call.1} parent=5 // pred_fallthru
        _
      %p1375 = scmp.le.s32.totalorder 2, %s23
      // Predicated region
      $region81: #{tpu_custom_call.1} parent=5 // pred_check
        %p1376 = pneg %p1375
      $region82: #{tpu_custom_call.1} parent=5 // pred_check_branch
        %1378 = sbr.rel (%p1376) target = $region84
      $region83: #{tpu_custom_call.1} parent=5 // pred_region
        %s1379 = ssub.s32 %s23, 2
        // Predicated region
        $region85: #{tpu_custom_call.1} parent=83 // pred_check
          %p1380 = pneg %p246
        $region86: #{tpu_custom_call.1} parent=83 // pred_check_branch
          %1382 = sbr.rel (%p1380) target = $region88
        $region87: #{tpu_custom_call.1} parent=83 // pred_region
          %s1383 = sand.u32 %s231, 1
          %s1384 = scalar_lea.sflag [#allocation4], %s1383
          %s1385 = sand.u32 %s231, 1
          %s1386 = smul.addr %s1385, 224
          %s1387 = scalar_lea.vmem [#allocation11], %s1386
          %1388 = dma.done %s1384, 3584
        $region88: #{tpu_custom_call.1} parent=83 // pred_fallthru
          _
      $region84: #{tpu_custom_call.1} parent=5 // pred_fallthru
        _
    $region6: #{tpu_custom_call.1} parent=1 // loop_footer
      %s27 = sadd.s32 1, %s23
    $region7: #{tpu_custom_call.1} parent=1 // loop_footer_branch
      %22 = sbr.rel target = $region3
    $region8: #{tpu_custom_call.1} parent=1 // loop_exit
      _
    %1389 = vsyncpa [#allocation3], 1
    %s1390 = scalar_lea.sflag [#allocation3], 1
    %1391 = vsyncpa %s1390, 1
    %1392 = vsyncpa [#allocation6], 1
    %1393 = vsyncpa [#allocation9], 1
    %1394 = vsyncpa [#allocation4], 1
    %s1395 = scalar_lea.sflag [#allocation4], 1
    %1396 = vsyncpa %s1395, 1

</llo_original>
